<compile_context>
chip_gen: v7x
topology: tpu7x:2x2x1
jax: 0.10.0
libtpu: 0.0.40
codegen_flags: <defaults>
</compile_context>

<pallas_src>
import functools

import jax
import jax.numpy as jnp
from jax.experimental import pallas as pl
from jax.experimental.pallas import tpu as pltpu


def _round_up(a, b):
    return ((a + b - 1) // b) * b


def _block_diag_repeat(w, pack):
    """(k, n) -> (pack*k, pack*n) block-diagonal with `pack` copies of w."""
    if pack == 1:
        return w
    k, n = w.shape
    eye = jnp.eye(pack, dtype=w.dtype)
    return jnp.einsum("pq,kn->pkqn", eye, w).reshape(pack * k, pack * n)


def _choose_block_rows(R):
    """Packed-row tile size.  Single block for tiny inputs; otherwise a grid
    that is (usually) a multiple of 2 (v7x has 2 TensorCores sharing the grid)
    with >=2 steps so step i+1's input DMA overlaps step i's compute on
    single-TC v5e/v6e.  VMEM is never the constraint (<1 MiB per step)."""
    if R <= 128:
        return R
    target_steps = 2 if R <= 1024 else 4
    return min(1024, _round_up(pl.cdiv(R, target_steps), 16))


# ----------------------------------------------------------------------------
# Kernel builder: layer structure is static config -> the layer loop unrolls at
# trace time.  Everything (matmuls, bias, residual, ReLU, LayerNorm) runs on
# one lane-dense (block_rows, 128) packed token tile per grid step.
# ----------------------------------------------------------------------------
def make_single_expert_kernel(layer_num, skips, latent_dim, use_norm,
                              compute_dtype):
    skips = list(skips)
    has_latent = latent_dim != 0
    need_sres = has_latent and len(skips) > 0
    coded_rest = [s for s in skips if s != 0] if has_latent else []
    need_slat = len(coded_rest) > 0
    has_norm = bool(use_norm and skips)
    eps = 1e-5

    def kernel(*refs):
        out_ref = refs[-1]
        it = iter(refs[:-1])
        x_ref = next(it)                                # (br, pack*in_dim) f32
        w0_ref = next(it)                               # (pack*in_dim, pack*D)
        sres_ref = next(it) if need_sres else None      # (pack*in_dim, pack*D)
        slat_ref = next(it) if need_slat else None      # (pack*in_dim, pack*lat)
        wm_ref = next(it) if layer_num > 1 else None    # (L-1, pack*D, pack*D)
        wl_ref = next(it) if need_slat else None        # (C, pack*lat, pack*D)
        b_ref = next(it)                                # (L, pack*D) f32
        gamma_ref = next(it) if has_norm else None      # (S, pack*D) f32
        beta_ref = next(it) if has_norm else None       # (S, pack*D) f32
        avg_ref = next(it) if has_norm else None        # (pack*D, pack*D) f32

        xb = x_ref[...].astype(compute_dtype)           # bf16 cast in-kernel

        # Layer 0: latent columns are folded into w0 -> one dot, no concat.
        h = jnp.dot(xb, w0_ref[...], preferred_element_type=jnp.float32)
        h = h + b_ref[0:1, :]

        # Residual base (main features) and latent slice via exact 0/1
        # selection matrices on the idle MXU (no unaligned lane slicing).
        if need_sres:
            x_res = jnp.dot(xb, sres_ref[...],
                            preferred_element_type=jnp.float32)
        elif not has_latent:
            x_res = xb.astype(jnp.float32)
        else:
            x_res = None                                # no skips -> never used
        lat = None
        if need_slat:
            lat = jnp.dot(xb, slat_ref[...],
                          preferred_element_type=jnp.float32
                          ).astype(compute_dtype)

        def epilogue(lid, h, x_res):
            if lid in skips:
                h = h + x_res
                if use_norm:
                    s = skips.index(lid)
                    # Per-token (32-lane segmented) LayerNorm stats as a single
                    # matmul with the resident block-averaging matrix (1/D).
                    mu = jnp.dot(h, avg_ref[...],
                                 preferred_element_type=jnp.float32)
                    ms = jnp.dot(h * h, avg_ref[...],
                                 preferred_element_type=jnp.float32)
                    h = (h - mu) * jax.lax.rsqrt(ms - mu * mu + eps)
                    h = h * gamma_ref[s:s + 1, :] + beta_ref[s:s + 1, :]
                elif lid < layer_num - 1:
                    h = jnp.maximum(h, 0.0)
                x_res = h
            elif lid < layer_num - 1:
                h = jnp.maximum(h, 0.0)
            return h, x_res

        h, x_res = epilogue(0, h, x_res)

        for lid in range(1, layer_num):
            acc = jnp.dot(h.astype(compute_dtype), wm_ref[lid - 1],
                          preferred_element_type=jnp.float32)
            if lid in coded_rest:
                acc = acc + jnp.dot(lat, wl_ref[coded_rest.index(lid)],
                                    preferred_element_type=jnp.float32)
            h = acc + b_ref[lid:lid + 1, :]
            h, x_res = epilogue(lid, h, x_res)

        out_ref[...] = h.astype(out_ref.dtype)

    return kernel


# ----------------------------------------------------------------------------
# Wrapper: packs `pack` tokens per 128-lane row (free reshape), builds the
# block-diagonal parameter set, and tiles over packed token rows.
# ----------------------------------------------------------------------------
def single_expert_forward(x, params, *, model_dim, layer_num, skips, latent_dim,
                          use_norm, block_rows=None, out_dtype=jnp.bfloat16,
                          compute_dtype=jnp.bfloat16, interpret=False):
    skips = list(skips)
    D = model_dim
    has_latent = latent_dim != 0
    in_dim = D + latent_dim
    T, xd = x.shape
    assert xd == in_dim

    # Lane packing factor: `pack` tokens per 128-lane row. Falls back to 1
    # (plain masked-store path, still correct) if model_dim doesn't divide 128.
    pack = 128 // D if (D < 128 and 128 % D == 0) else 1
    Dp, inp_p = pack * D, pack * in_dim

    coded = [0] + skips                       # torch's coded_layer
    coded_rest = [s for s in skips if s != 0] if has_latent else []
    need_sres = has_latent and len(skips) > 0
    need_slat = len(coded_rest) > 0
    has_norm = bool(use_norm and skips)

    # Pack tokens: contiguous reshape (free bitcast), no dtype cast; a pad is
    # only needed when T is not a multiple of `pack`.
    Tp = _round_up(T, pack)
    xr = x if Tp == T else jnp.pad(x, ((0, Tp - T), (0, 0)))
    R = Tp // pack
    x_packed = xr.reshape(R, inp_p)

    br = block_rows if block_rows is not None else _choose_block_rows(R)
    if br >= R:
        br, n_steps = R, 1
    else:
        br = _round_up(br, 16)                # legal tile for f32 and bf16
        n_steps = pl.cdiv(R, br)              # ragged last block is masked
    # NOTE: with a ragged last block the out-of-range rows hold garbage and may
    # produce NaN inside rsqrt; those rows are masked on writeback (discarded).

    def bd(w):
        return _block_diag_repeat(w, pack)

    w_main = params["w_main"]
    if has_latent:
        w0_full = jnp.concatenate([w_main[0], params["w_lat"][0]], axis=0)
    else:
        w0_full = w_main[0]
    w0p = bd(w0_full).astype(compute_dtype)                   # (inp_p, Dp)

    inputs = [x_packed, w0p]
    in_specs = [pl.BlockSpec((br, inp_p), lambda i: (i, 0)),
                pl.BlockSpec(w0p.shape, lambda i: (0, 0))]

    if need_sres:
        s_res = bd(jnp.eye(in_dim, D, dtype=jnp.float32)).astype(compute_dtype)
        inputs.append(s_res)
        in_specs.append(pl.BlockSpec(s_res.shape, lambda i: (0, 0)))
    if need_slat:
        s_lat = bd(jnp.eye(in_dim, latent_dim, k=-D, dtype=jnp.float32)
                   ).astype(compute_dtype)
        inputs.append(s_lat)
        in_specs.append(pl.BlockSpec(s_lat.shape, lambda i: (0, 0)))
    if layer_num > 1:
        wm = jnp.stack([bd(w_main[l]) for l in range(1, layer_num)]
                       ).astype(compute_dtype)                # (L-1, Dp, Dp)
        inputs.append(wm)
        in_specs.append(pl.BlockSpec(wm.shape, lambda i: (0, 0, 0)))
    if need_slat:
        wl = jnp.stack([bd(params["w_lat"][coded.index(l)]) for l in coded_rest]
                       ).astype(compute_dtype)                # (C, pack*lat, Dp)
        inputs.append(wl)
        in_specs.append(pl.BlockSpec(wl.shape, lambda i: (0, 0, 0)))
    b = jnp.tile(params["b"].astype(jnp.float32), (1, pack))  # (L, Dp)
    inputs.append(b)
    in_specs.append(pl.BlockSpec(b.shape, lambda i: (0, 0)))
    if has_norm:
        gamma = jnp.tile(params["gamma"].astype(jnp.float32), (1, pack))
        beta = jnp.tile(params["beta"].astype(jnp.float32), (1, pack))
        avg = bd(jnp.full((D, D), 1.0 / D, dtype=jnp.float32))
        inputs += [gamma, beta, avg]
        in_specs += [pl.BlockSpec(gamma.shape, lambda i: (0, 0)),
                     pl.BlockSpec(beta.shape, lambda i: (0, 0)),
                     pl.BlockSpec(avg.shape, lambda i: (0, 0))]

    # Advisory cost estimate (bytes dominate; MXU work is tiny).
    mm = [(inp_p, Dp)]
    if need_sres:
        mm.append((inp_p, Dp))
    if need_slat:
        mm.append((inp_p, pack * latent_dim))
    for lid in range(1, layer_num):
        mm.append((Dp, Dp))
        if lid in coded_rest:
            mm.append((pack * latent_dim, Dp))
    if has_norm:
        mm += [(Dp, Dp)] * (2 * len(skips))
    flops = 2 * R * sum(k * n for k, n in mm)
    trans = R * Dp * (len(skips) if has_norm else 0)
    param_bytes = int(sum(int(a.size) * a.dtype.itemsize for a in inputs[1:]))
    bytes_accessed = int(x_packed.size * x_packed.dtype.itemsize
                         + R * Dp * jnp.dtype(out_dtype).itemsize + param_bytes)

    kernel = make_single_expert_kernel(layer_num, skips, latent_dim, use_norm,
                                       compute_dtype)
    out = pl.pallas_call(
        kernel,
        out_shape=jax.ShapeDtypeStruct((R, Dp), out_dtype),
        grid=(n_steps,),
        in_specs=in_specs,
        out_specs=pl.BlockSpec((br, Dp), lambda i: (i, 0)),
        compiler_params=pltpu.CompilerParams(
            dimension_semantics=("parallel",)),
        cost_estimate=pl.CostEstimate(flops=flops, transcendentals=trans,
                                      bytes_accessed=bytes_accessed),
        interpret=interpret,
    )(*inputs)

    out = out.reshape(Tp, D)                  # free (contiguous) un-pack
    return out[:T] if Tp != T else out


# ----------------------------------------------------------------------------
# Pure-JAX reference that mirrors the PyTorch forward.  `compute_dtype`
# controls the MXU-input precision so it can match the kernel's bf16 rounding
# points while keeping fp32 accumulation / residual / LayerNorm.
# ----------------------------------------------------------------------------
def single_expert_reference(x, params, *, model_dim, layer_num, skips,
                            latent_dim, use_norm, compute_dtype=jnp.float32):
    skips = list(skips)
    has_latent = latent_dim != 0
    coded = [0] + skips

    xc = x.astype(compute_dtype).astype(jnp.float32)
    if has_latent:
        x_main, lat = xc[:, :model_dim], xc[:, model_dim:]
    else:
        x_main, lat = xc, None
    h = x_main
    x_res = x_main
    for lid in range(layer_num):
        if has_latent and lid in coded:
            inp = jnp.concatenate([h, lat], axis=-1)
            w = jnp.concatenate(
                [params["w_main"][lid], params["w_lat"][coded.index(lid)]],
                axis=0)
        else:
            inp, w = h, params["w_main"][lid]
        acc = jnp.dot(inp.astype(compute_dtype), w.astype(compute_dtype),
                      preferred_element_type=jnp.float32)
        h = acc + params["b"][lid][None, :]
        if lid in skips:
            h = h + x_res
            if use_norm:
                s = skips.index(lid)
                mu = jnp.mean(h, axis=-1, keepdims=True)
                var = jnp.mean(jnp.square(h - mu), axis=-1, keepdims=True)
                h = ((h - mu) * jax.lax.rsqrt(var + 1e-5)
                     * params["gamma"][s][None, :] + params["beta"][s][None, :])
            elif lid < layer_num - 1:
                h = jnp.maximum(h, 0.0)
            x_res = h
        elif lid < layer_num - 1:
            h = jnp.maximum(h, 0.0)
    return h


def init_params(key, *, model_dim, layer_num, skips, latent_dim, use_norm,
                init_factor=1.0):
    skips = list(skips)
    has_latent = latent_dim != 0
    coded = [0] + skips

    kw, kl, kb = jax.random.split(key, 3)
    w_main = jax.random.normal(kw, (layer_num, model_dim, model_dim),
                               jnp.float32) * 0.08
    b = jax.random.normal(kb, (layer_num, model_dim), jnp.float32) * 0.02
    params = {"w_main": w_main * init_factor, "b": b * init_factor}
    if has_latent:
        w_lat = jax.random.normal(kl, (len(coded), latent_dim, model_dim),
                                  jnp.float32) * 0.08
        params["w_lat"] = w_lat * init_factor
    if use_norm and skips:
        params["gamma"] = jnp.ones((len(skips), model_dim), jnp.float32)
        params["beta"] = jnp.zeros((len(skips), model_dim), jnp.float32)
    return params


if __name__ == "__main__":
    MODEL_DIM = 32
    LAYER_NUM = 4
    SKIPS = [2]
    LATENT_DIM = 8
    USE_NORM = True
    T = 1024      # tokens routed to this expert -> 256 packed rows, grid = 2

    key = jax.random.PRNGKey(0)
    key, kx = jax.random.split(key)
    x = jax.random.normal(kx, (T, MODEL_DIM + LATENT_DIM), jnp.float32)

    params = init_params(key, model_dim=MODEL_DIM, layer_num=LAYER_NUM,
                         skips=SKIPS, latent_dim=LATENT_DIM, use_norm=USE_NORM)

    fwd = functools.partial(single_expert_forward, model_dim=MODEL_DIM,
                            layer_num=LAYER_NUM, skips=SKIPS,
                            latent_dim=LATENT_DIM, use_norm=USE_NORM)
    out = jax.jit(lambda xx, pp: fwd(xx, pp))(x, params)
    out = jax.block_until_ready(out)
    assert out.shape == (T, MODEL_DIM)
    assert out.dtype == jnp.bfloat16
    out_f32 = out.astype(jnp.float32)

    # Numerics-matched reference (same bf16 MXU inputs, fp32 accumulation/LN).
    ref_bf16 = single_expert_reference(
        x, params, model_dim=MODEL_DIM, layer_num=LAYER_NUM, skips=SKIPS,
        latent_dim=LATENT_DIM, use_norm=USE_NORM, compute_dtype=jnp.bfloat16)
    ref_bf16 = jax.block_until_ready(ref_bf16)
    err_b = float(jnp.max(jnp.abs(out_f32 - ref_bf16)))
    assert jnp.allclose(out_f32, ref_bf16, atol=2e-2, rtol=2e-2), (
        f"max abs diff vs bf16-matched ref: {err_b}")

    # Full-precision semantic check (the PyTorch module runs in fp32).
    ref_f32 = single_expert_reference(
        x, params, model_dim=MODEL_DIM, layer_num=LAYER_NUM, skips=SKIPS,
        latent_dim=LATENT_DIM, use_norm=USE_NORM, compute_dtype=jnp.float32)
    ref_f32 = jax.block_until_ready(ref_f32)
    err_f = float(jnp.max(jnp.abs(out_f32 - ref_f32)))
    assert jnp.allclose(out_f32, ref_f32, atol=5e-2, rtol=5e-2), (
        f"max abs diff vs fp32 ref: {err_f}")

    print("KERNEL_OK")
</pallas_src>

<mosaic_0001>
module attributes {stable_mosaic.version = 11 : i64} {
  func.func @kernel(%arg0: i32, %arg1: memref<128x160xf32, #tpu.memory_space<vmem>>, %arg2: memref<160x128xbf16, #tpu.memory_space<vmem>>, %arg3: memref<160x128xbf16, #tpu.memory_space<vmem>>, %arg4: memref<160x32xbf16, #tpu.memory_space<vmem>>, %arg5: memref<3x128x128xbf16, #tpu.memory_space<vmem>>, %arg6: memref<1x32x128xbf16, #tpu.memory_space<vmem>>, %arg7: memref<4x128xf32, #tpu.memory_space<vmem>>, %arg8: memref<1x128xf32, #tpu.memory_space<vmem>>, %arg9: memref<1x128xf32, #tpu.memory_space<vmem>>, %arg10: memref<128x128xf32, #tpu.memory_space<vmem>>, %arg11: memref<128x128xbf16, #tpu.memory_space<vmem>>) attributes {dimension_semantics = [#tpu.dimension_semantics<parallel>], iteration_bounds = array<i64: 2>, scalar_prefetch = 0 : i64, scratch_operands = 0 : i64, tpu.core_type = #tpu.core_type<tc>, window_params = [{transform_indices = @transform_0, window_bounds = array<i64: 128, 160>}, {pipeline_mode = #tpu.pipeline_mode<synchronous>, transform_indices = @transform_1, window_bounds = array<i64: 160, 128>}, {pipeline_mode = #tpu.pipeline_mode<synchronous>, transform_indices = @transform_2, window_bounds = array<i64: 160, 128>}, {pipeline_mode = #tpu.pipeline_mode<synchronous>, transform_indices = @transform_3, window_bounds = array<i64: 160, 32>}, {pipeline_mode = #tpu.pipeline_mode<synchronous>, transform_indices = @transform_4, window_bounds = array<i64: 3, 128, 128>}, {pipeline_mode = #tpu.pipeline_mode<synchronous>, transform_indices = @transform_5, window_bounds = array<i64: 1, 32, 128>}, {pipeline_mode = #tpu.pipeline_mode<synchronous>, transform_indices = @transform_6, window_bounds = array<i64: 4, 128>}, {pipeline_mode = #tpu.pipeline_mode<synchronous>, transform_indices = @transform_7, window_bounds = array<i64: 1, 128>}, {pipeline_mode = #tpu.pipeline_mode<synchronous>, transform_indices = @transform_8, window_bounds = array<i64: 1, 128>}, {pipeline_mode = #tpu.pipeline_mode<synchronous>, transform_indices = @transform_9, window_bounds = array<i64: 128, 128>}, {transform_indices = @transform_10, window_bounds = array<i64: 128, 128>}]} {
    %c0 = arith.constant 0 : index
    %c0_0 = arith.constant 0 : index
    %0 = vector.load %arg1[%c0, %c0_0] : memref<128x160xf32, #tpu.memory_space<vmem>>, vector<128x160xf32>
    %1 = arith.truncf %0 : vector<128x160xf32> to vector<128x160xbf16>
    %c0_1 = arith.constant 0 : index
    %c0_2 = arith.constant 0 : index
    %2 = vector.load %arg2[%c0_1, %c0_2] : memref<160x128xbf16, #tpu.memory_space<vmem>>, vector<160x128xbf16>
    %cst = arith.constant dense<0.000000e+00> : vector<128x128xf32>
    %3 = tpu.matmul %1, %2, %cst {dimension_numbers = #tpu.dot_dimension_numbers<[1], [0], [0], [1], [0, 0, 1, 1], [], []>} : vector<128x160xbf16>, vector<160x128xbf16>, vector<128x128xf32> -> vector<128x128xf32>
    %c0_3 = arith.constant 0 : index
    %c0_4 = arith.constant 0 : index
    %4 = vector.load %arg7[%c0_3, %c0_4] : memref<4x128xf32, #tpu.memory_space<vmem>>, vector<1x128xf32>
    %5 = vector.broadcast %4 : vector<1x128xf32> to vector<128x128xf32>
    %6 = arith.addf %3, %5 : vector<128x128xf32>
    %c0_5 = arith.constant 0 : index
    %c0_6 = arith.constant 0 : index
    %7 = vector.load %arg3[%c0_5, %c0_6] : memref<160x128xbf16, #tpu.memory_space<vmem>>, vector<160x128xbf16>
    %cst_7 = arith.constant dense<0.000000e+00> : vector<128x128xf32>
    %8 = tpu.matmul %1, %7, %cst_7 {dimension_numbers = #tpu.dot_dimension_numbers<[1], [0], [0], [1], [0, 0, 1, 1], [], []>} : vector<128x160xbf16>, vector<160x128xbf16>, vector<128x128xf32> -> vector<128x128xf32>
    %c0_8 = arith.constant 0 : index
    %c0_9 = arith.constant 0 : index
    %9 = vector.load %arg4[%c0_8, %c0_9] : memref<160x32xbf16, #tpu.memory_space<vmem>>, vector<160x32xbf16>
    %cst_10 = arith.constant dense<0.000000e+00> : vector<128x32xf32>
    %10 = tpu.matmul %1, %9, %cst_10 {dimension_numbers = #tpu.dot_dimension_numbers<[1], [0], [0], [1], [0, 0, 1, 1], [], []>} : vector<128x160xbf16>, vector<160x32xbf16>, vector<128x32xf32> -> vector<128x32xf32>
    %11 = arith.truncf %10 : vector<128x32xf32> to vector<128x32xbf16>
    %cst_11 = arith.constant 0.000000e+00 : f32
    %12 = vector.broadcast %cst_11 : f32 to vector<128x128xf32>
    %13 = arith.maximumf %6, %12 : vector<128x128xf32>
    %14 = arith.truncf %13 : vector<128x128xf32> to vector<128x128xbf16>
    %c0_12 = arith.constant 0 : index
    %c0_13 = arith.constant 0 : index
    %c0_14 = arith.constant 0 : index
    %15 = vector.load %arg5[%c0_12, %c0_13, %c0_14] : memref<3x128x128xbf16, #tpu.memory_space<vmem>>, vector<1x128x128xbf16>
    %16 = vector.shape_cast %15 : vector<1x128x128xbf16> to vector<128x128xbf16>
    %cst_15 = arith.constant dense<0.000000e+00> : vector<128x128xf32>
    %17 = tpu.matmul %14, %16, %cst_15 {dimension_numbers = #tpu.dot_dimension_numbers<[1], [0], [0], [1], [0, 0, 1, 1], [], []>} : vector<128x128xbf16>, vector<128x128xbf16>, vector<128x128xf32> -> vector<128x128xf32>
    %c1 = arith.constant 1 : index
    %c0_16 = arith.constant 0 : index
    %18 = vector.load %arg7[%c1, %c0_16] : memref<4x128xf32, #tpu.memory_space<vmem>>, vector<1x128xf32>
    %19 = vector.broadcast %18 : vector<1x128xf32> to vector<128x128xf32>
    %20 = arith.addf %17, %19 : vector<128x128xf32>
    %cst_17 = arith.constant 0.000000e+00 : f32
    %21 = vector.broadcast %cst_17 : f32 to vector<128x128xf32>
    %22 = arith.maximumf %20, %21 : vector<128x128xf32>
    %23 = arith.truncf %22 : vector<128x128xf32> to vector<128x128xbf16>
    %c1_18 = arith.constant 1 : index
    %c0_19 = arith.constant 0 : index
    %c0_20 = arith.constant 0 : index
    %24 = vector.load %arg5[%c1_18, %c0_19, %c0_20] : memref<3x128x128xbf16, #tpu.memory_space<vmem>>, vector<1x128x128xbf16>
    %25 = vector.shape_cast %24 : vector<1x128x128xbf16> to vector<128x128xbf16>
    %cst_21 = arith.constant dense<0.000000e+00> : vector<128x128xf32>
    %26 = tpu.matmul %23, %25, %cst_21 {dimension_numbers = #tpu.dot_dimension_numbers<[1], [0], [0], [1], [0, 0, 1, 1], [], []>} : vector<128x128xbf16>, vector<128x128xbf16>, vector<128x128xf32> -> vector<128x128xf32>
    %c0_22 = arith.constant 0 : index
    %c0_23 = arith.constant 0 : index
    %c0_24 = arith.constant 0 : index
    %27 = vector.load %arg6[%c0_22, %c0_23, %c0_24] : memref<1x32x128xbf16, #tpu.memory_space<vmem>>, vector<1x32x128xbf16>
    %28 = vector.shape_cast %27 : vector<1x32x128xbf16> to vector<32x128xbf16>
    %cst_25 = arith.constant dense<0.000000e+00> : vector<128x128xf32>
    %29 = tpu.matmul %11, %28, %cst_25 {dimension_numbers = #tpu.dot_dimension_numbers<[1], [0], [0], [1], [0, 0, 1, 1], [], []>} : vector<128x32xbf16>, vector<32x128xbf16>, vector<128x128xf32> -> vector<128x128xf32>
    %30 = arith.addf %26, %29 : vector<128x128xf32>
    %c2 = arith.constant 2 : index
    %c0_26 = arith.constant 0 : index
    %31 = vector.load %arg7[%c2, %c0_26] : memref<4x128xf32, #tpu.memory_space<vmem>>, vector<1x128xf32>
    %32 = vector.broadcast %31 : vector<1x128xf32> to vector<128x128xf32>
    %33 = arith.addf %30, %32 : vector<128x128xf32>
    %34 = arith.addf %33, %8 : vector<128x128xf32>
    %c0_27 = arith.constant 0 : index
    %c0_28 = arith.constant 0 : index
    %35 = vector.load %arg10[%c0_27, %c0_28] : memref<128x128xf32, #tpu.memory_space<vmem>>, vector<128x128xf32>
    %cst_29 = arith.constant dense<0.000000e+00> : vector<128x128xf32>
    %36 = tpu.matmul %34, %35, %cst_29 {dimension_numbers = #tpu.dot_dimension_numbers<[1], [0], [0], [1], [0, 0, 1, 1], [], []>} : vector<128x128xf32>, vector<128x128xf32>, vector<128x128xf32> -> vector<128x128xf32>
    %37 = arith.mulf %34, %34 : vector<128x128xf32>
    %c0_30 = arith.constant 0 : index
    %c0_31 = arith.constant 0 : index
    %38 = vector.load %arg10[%c0_30, %c0_31] : memref<128x128xf32, #tpu.memory_space<vmem>>, vector<128x128xf32>
    %cst_32 = arith.constant dense<0.000000e+00> : vector<128x128xf32>
    %39 = tpu.matmul %37, %38, %cst_32 {dimension_numbers = #tpu.dot_dimension_numbers<[1], [0], [0], [1], [0, 0, 1, 1], [], []>} : vector<128x128xf32>, vector<128x128xf32>, vector<128x128xf32> -> vector<128x128xf32>
    %40 = arith.subf %34, %36 : vector<128x128xf32>
    %41 = arith.mulf %36, %36 : vector<128x128xf32>
    %42 = arith.subf %39, %41 : vector<128x128xf32>
    %cst_33 = arith.constant 9.99999974E-6 : f32
    %43 = vector.broadcast %cst_33 : f32 to vector<128x128xf32>
    %44 = arith.addf %42, %43 : vector<128x128xf32>
    %45 = math.rsqrt %44 : vector<128x128xf32>
    %46 = arith.mulf %40, %45 : vector<128x128xf32>
    %c0_34 = arith.constant 0 : index
    %c0_35 = arith.constant 0 : index
    %47 = vector.load %arg8[%c0_34, %c0_35] : memref<1x128xf32, #tpu.memory_space<vmem>>, vector<1x128xf32>
    %48 = vector.broadcast %47 : vector<1x128xf32> to vector<128x128xf32>
    %49 = arith.mulf %46, %48 : vector<128x128xf32>
    %c0_36 = arith.constant 0 : index
    %c0_37 = arith.constant 0 : index
    %50 = vector.load %arg9[%c0_36, %c0_37] : memref<1x128xf32, #tpu.memory_space<vmem>>, vector<1x128xf32>
    %51 = vector.broadcast %50 : vector<1x128xf32> to vector<128x128xf32>
    %52 = arith.addf %49, %51 : vector<128x128xf32>
    %53 = arith.truncf %52 : vector<128x128xf32> to vector<128x128xbf16>
    %c2_38 = arith.constant 2 : index
    %c0_39 = arith.constant 0 : index
    %c0_40 = arith.constant 0 : index
    %54 = vector.load %arg5[%c2_38, %c0_39, %c0_40] : memref<3x128x128xbf16, #tpu.memory_space<vmem>>, vector<1x128x128xbf16>
    %55 = vector.shape_cast %54 : vector<1x128x128xbf16> to vector<128x128xbf16>
    %cst_41 = arith.constant dense<0.000000e+00> : vector<128x128xf32>
    %56 = tpu.matmul %53, %55, %cst_41 {dimension_numbers = #tpu.dot_dimension_numbers<[1], [0], [0], [1], [0, 0, 1, 1], [], []>} : vector<128x128xbf16>, vector<128x128xbf16>, vector<128x128xf32> -> vector<128x128xf32>
    %c3 = arith.constant 3 : index
    %c0_42 = arith.constant 0 : index
    %57 = vector.load %arg7[%c3, %c0_42] : memref<4x128xf32, #tpu.memory_space<vmem>>, vector<1x128xf32>
    %58 = vector.broadcast %57 : vector<1x128xf32> to vector<128x128xf32>
    %59 = arith.addf %56, %58 : vector<128x128xf32>
    %60 = arith.truncf %59 : vector<128x128xf32> to vector<128x128xbf16>
    %c0_43 = arith.constant 0 : index
    %c0_44 = arith.constant 0 : index
    %61 = vector.load %arg11[%c0_43, %c0_44] : memref<128x128xbf16, #tpu.memory_space<vmem>>, vector<128x128xbf16>
    tpu.vector_store %arg11[%c0_43, %c0_44], %60 {strides = array<i32>} : memref<128x128xbf16, #tpu.memory_space<vmem>>, vector<128x128xbf16>,
    return
  }
  func.func @transform_0(%arg0: i32) -> (i32, i32) {
    %c0_i32 = arith.constant 0 : i32
    %c0_i32_0 = arith.constant 0 : i32
    return %arg0, %c0_i32 : i32, i32
  }
  func.func @transform_1(%arg0: i32) -> (i32, i32) {
    %c0_i32 = arith.constant 0 : i32
    %c0_i32_0 = arith.constant 0 : i32
    %c0_i32_1 = arith.constant 0 : i32
    return %c0_i32, %c0_i32_0 : i32, i32
  }
  func.func @transform_2(%arg0: i32) -> (i32, i32) {
    %c0_i32 = arith.constant 0 : i32
    %c0_i32_0 = arith.constant 0 : i32
    %c0_i32_1 = arith.constant 0 : i32
    return %c0_i32, %c0_i32_0 : i32, i32
  }
  func.func @transform_3(%arg0: i32) -> (i32, i32) {
    %c0_i32 = arith.constant 0 : i32
    %c0_i32_0 = arith.constant 0 : i32
    %c0_i32_1 = arith.constant 0 : i32
    return %c0_i32, %c0_i32_0 : i32, i32
  }
  func.func @transform_4(%arg0: i32) -> (i32, i32, i32) {
    %c0_i32 = arith.constant 0 : i32
    %c0_i32_0 = arith.constant 0 : i32
    %c0_i32_1 = arith.constant 0 : i32
    %c0_i32_2 = arith.constant 0 : i32
    return %c0_i32, %c0_i32_0, %c0_i32_1 : i32, i32, i32
  }
  func.func @transform_5(%arg0: i32) -> (i32, i32, i32) {
    %c0_i32 = arith.constant 0 : i32
    %c0_i32_0 = arith.constant 0 : i32
    %c0_i32_1 = arith.constant 0 : i32
    %c0_i32_2 = arith.constant 0 : i32
    return %c0_i32, %c0_i32_0, %c0_i32_1 : i32, i32, i32
  }
  func.func @transform_6(%arg0: i32) -> (i32, i32) {
    %c0_i32 = arith.constant 0 : i32
    %c0_i32_0 = arith.constant 0 : i32
    %c0_i32_1 = arith.constant 0 : i32
    return %c0_i32, %c0_i32_0 : i32, i32
  }
  func.func @transform_7(%arg0: i32) -> (i32, i32) {
    %c0_i32 = arith.constant 0 : i32
    %c0_i32_0 = arith.constant 0 : i32
    %c0_i32_1 = arith.constant 0 : i32
    return %c0_i32, %c0_i32_0 : i32, i32
  }
  func.func @transform_8(%arg0: i32) -> (i32, i32) {
    %c0_i32 = arith.constant 0 : i32
    %c0_i32_0 = arith.constant 0 : i32
    %c0_i32_1 = arith.constant 0 : i32
    return %c0_i32, %c0_i32_0 : i32, i32
  }
  func.func @transform_9(%arg0: i32) -> (i32, i32) {
    %c0_i32 = arith.constant 0 : i32
    %c0_i32_0 = arith.constant 0 : i32
    %c0_i32_1 = arith.constant 0 : i32
    return %c0_i32, %c0_i32_0 : i32, i32
  }
  func.func @transform_10(%arg0: i32) -> (i32, i32) {
    %c0_i32 = arith.constant 0 : i32
    %c0_i32_0 = arith.constant 0 : i32
    return %arg0, %c0_i32 : i32, i32
  }
}

</mosaic_0001>

<llo_original>
// kernel: tile.19
$region0: #{tile.19}
  %s0 = inlined_call_operand.vmem [shape: f32[4,4,32], index: 0, kind: input, shape index: {}]
  %s1 = inlined_call_operand.vmem [shape: f32[4,128], index: 1, kind: output, shape index: {}]
  $region1: #{tile.19} parent=0
    #allocation0 [shape = 'u8[4096]{0}', space=vmem, size = 0x1000, scoped, tag = 'scoped mem for output reshape']
    #allocation1 [shape = 'u8[16384]{0}', space=vmem, size = 0x4000, scoped, tag = 'scoped mem for input reshape']
    %s3 = sshllo.u32 0, 4
    %s4 = smul.addr 4, 3
    %s5 = scalar_lea.vmem %s0, %s4
    %v6 = vld [vmem:[%s5] sm:%s3]
    %s7 = scalar_lea.vmem [#allocation1], 24
    %8 = vst [vmem:[%s7] sm:%s3] %v6
    %s9 = smul.addr 4, 2
    %s10 = scalar_lea.vmem %s0, %s9
    %v11 = vld [vmem:[%s10] sm:%s3]
    %s12 = scalar_lea.vmem [#allocation1], 16
    %13 = vst [vmem:[%s12] sm:%s3] %v11
    %s14 = scalar_lea.vmem %s0, 4
    %v15 = vld [vmem:[%s14] sm:%s3]
    %s16 = scalar_lea.vmem [#allocation1], 8
    %17 = vst [vmem:[%s16] sm:%s3] %v15
    %v18 = vld [vmem:[%s0] sm:%s3]
    %19 = vst [vmem:[#allocation1] sm:%s3] %v18
    %v20 = vld [vmem:[#allocation1] ss:$8 sm:$0xf]
    %vm21 = vcmask 261120
    %22 = vst.msk [vmem:[#allocation0] sm:$0xf] %vm21, %v20
    %s23 = scalar_lea.vmem [#allocation1], 3
    %v24 = vld [vmem:[%s23] ss:$8 sm:$0xf]
    %25 = vrot.lane.b32.xlu0 %v24, 96
    %v26 = vpop.permute.xlu0 %25
    %vm27 = vcmask 1048320
    %28 = vst.msk [vmem:[#allocation0] sm:$0xf] %vm27, %v26
    %s29 = scalar_lea.vmem [#allocation1], 2
    %v30 = vld [vmem:[%s29] ss:$8 sm:$0xf]
    %31 = vrot.lane.b32.xlu0 %v30, 64
    %v32 = vpop.permute.xlu0 %31
    %vm33 = vcmask 785920
    %34 = vst.msk [vmem:[#allocation0] sm:$0xf] %vm33, %v32
    %s35 = scalar_lea.vmem [#allocation1], 1
    %v36 = vld [vmem:[%s35] ss:$8 sm:$0xf]
    %37 = vrot.lane.b32.xlu0 %v36, 32
    %v38 = vpop.permute.xlu0 %37
    %vm39 = vcmask 523520
    %40 = vst.msk [vmem:[#allocation0] sm:$0xf] %vm39, %v38
    %s42 = sshllo.u32 0, 4
    %v44 = vld [vmem:[#allocation0] sm:%s42]
    %s45 = sshllo.u32 0, 4
    %46 = vst [vmem:[%s1] sm:%s45] %v44

// kernel: _lambda_.1
$region0: #{_lambda_.1}
  #allocation0 [shape = 'u32[]', space=smem, size = 0x4, offset = 0x4, fixed_abs, tag = 'smem constant byte address 0x4 - core index']
  #allocation1 [shape = 'u32[144,128]{1,0:T(1,128)}', space=vmem, size = 0x12000, scoped, tag = 'internal scratch']
  %s0 = inlined_call_operand.vmem [shape: f32[256,160], index: 0, kind: input, shape index: {}]
  %s1 = inlined_call_operand.vmem [shape: bf16[160,128], index: 1, kind: input, shape index: {}]
  %s2 = inlined_call_operand.vmem [shape: bf16[160,128], index: 2, kind: input, shape index: {}]
  %s3 = inlined_call_operand.vmem [shape: bf16[160,32], index: 3, kind: input, shape index: {}]
  %s4 = inlined_call_operand.vmem [shape: bf16[3,128,128], index: 4, kind: input, shape index: {}]
  %s5 = inlined_call_operand.vmem [shape: bf16[1,32,128], index: 5, kind: input, shape index: {}]
  %s6 = inlined_call_operand.vmem [shape: f32[4,128], index: 6, kind: input, shape index: {}]
  %s7 = inlined_call_operand.vmem [shape: f32[1,128], index: 7, kind: input, shape index: {}]
  %s8 = inlined_call_operand.vmem [shape: f32[1,128], index: 8, kind: input, shape index: {}]
  %s9 = inlined_call_operand.vmem [shape: f32[128,128], index: 9, kind: input, shape index: {}]
  %s10 = inlined_call_operand.vmem [shape: bf16[256,128], index: 10, kind: output, shape index: {}]
  %s11 = sld [smem:[#allocation0]]
  $region73: #{_lambda_.1} parent=0
    _
  %s13 = ssub.s32 1, %s11
  %s14 = scalar_select 0, %s13, %s11
  loop: start=0, step=1, limit=4
  $region2: #{_lambda_.1} parent=0 // loop_pre_header
    _
  $region3: #{_lambda_.1} parent=0 // loop_header
    %s16 = sphi 0, %s20
    %p17 = scmp.ge.s32.totalorder %s16, 4
    %s26 = sphi 0, %s28
    %s29 = sphi 0, %s26
    %s30 = sphi 0, %s29
    %s46 = sphi 0, %s30
    %s50 = sphi 0, %s50
    %s52 = sphi 0, %s50
    %s53 = sphi 0, %s52
    %s67 = sphi 0, %s53
    %s71 = sphi 0, %s71
    %s73 = sphi 0, %s71
    %s74 = sphi 0, %s73
    %s88 = sphi 0, %s74
    %s92 = sphi 0, %s92
    %s94 = sphi 0, %s92
    %s95 = sphi 0, %s94
    %s109 = sphi 0, %s95
    %s113 = sphi 0, %s113
    %s115 = sphi 0, %s113
    %s116 = sphi 0, %s115
    %s130 = sphi 0, %s116
    %s134 = sphi 0, %s134
    %s136 = sphi 0, %s134
    %s137 = sphi 0, %s136
    %s151 = sphi 0, %s137
    %s155 = sphi 0, %s155
    %s157 = sphi 0, %s155
    %s158 = sphi 0, %s157
    %s172 = sphi 0, %s158
    %s176 = sphi 0, %s176
    %s178 = sphi 0, %s176
    %s179 = sphi 0, %s178
    %s193 = sphi 0, %s179
    %s197 = sphi 0, %s197
    %s199 = sphi 0, %s197
    %s200 = sphi 0, %s199
    %s214 = sphi 0, %s200
    %s218 = sphi 0, %s218
    %s220 = sphi 0, %s218
    %s221 = sphi 0, %s220
    %s235 = sphi 0, %s221
    %s241 = sphi 0, %s243
    %s244 = sphi 0, %s241
    %s245 = sphi 0, %s244
    %s261 = sphi 0, %s245
  $region4: #{_lambda_.1} parent=0 // loop_header_branch
    %19 = sbr.rel (%p17) target = $region8
  $region5: #{_lambda_.1} parent=0 // loop_body
    %s21 = ssub.s32 %s16, 1
    %s22 = ssub.s32 %s16, 2
    %s23 = sadd.s32 %s16, 1
    %s24 = ssub.s32 %s16, %s23
    %p25 = scmp.eq.s32.totalorder %s24, 0
    %s27 = sadd.s32 %s26, 1
    %s28 = scalar_select %p25, %s26, %s27
    %p31 = pneg %p25
    %p32 = scmp.eq.s32.totalorder %s16, 1
    %p33 = por %p31, %p32
    %p34 = scmp.ne.s32.totalorder %s26, %s29
    %p35 = scmp.eq.s32.totalorder %s16, 0
    %p36 = por %p34, %p35
    %p37 = scmp.ne.s32.totalorder %s26, %s29
    %p38 = scmp.eq.s32.totalorder %s21, 1
    %p39 = por %p37, %p38
    %p40 = scmp.ne.s32.totalorder %s29, %s30
    %p41 = scmp.eq.s32.totalorder %s21, 0
    %p42 = por %p40, %p41
    %p43 = scmp.ne.s32.totalorder %s29, %s30
    %p44 = scmp.eq.s32.totalorder %s22, 1
    %p45 = por %p43, %p44
    %p47 = scmp.ne.s32.totalorder %s30, %s46
    %p48 = scmp.eq.s32.totalorder %s22, 0
    %p49 = por %p47, %p48
    %s51 = sadd.s32 %s50, 1
    %p54 = scmp.eq.s32.totalorder %s16, 1
    %p55 = scmp.ne.s32.totalorder %s50, %s52
    %p56 = scmp.eq.s32.totalorder %s16, 0
    %p57 = por %p55, %p56
    %p58 = scmp.ne.s32.totalorder %s50, %s52
    %p59 = scmp.eq.s32.totalorder %s21, 1
    %p60 = por %p58, %p59
    %p61 = scmp.ne.s32.totalorder %s52, %s53
    %p62 = scmp.eq.s32.totalorder %s21, 0
    %p63 = por %p61, %p62
    %p64 = scmp.ne.s32.totalorder %s52, %s53
    %p65 = scmp.eq.s32.totalorder %s22, 1
    %p66 = por %p64, %p65
    %p68 = scmp.ne.s32.totalorder %s53, %s67
    %p69 = scmp.eq.s32.totalorder %s22, 0
    %p70 = por %p68, %p69
    %s72 = sadd.s32 %s71, 1
    %p75 = scmp.eq.s32.totalorder %s16, 1
    %p76 = scmp.ne.s32.totalorder %s71, %s73
    %p77 = scmp.eq.s32.totalorder %s16, 0
    %p78 = por %p76, %p77
    %p79 = scmp.ne.s32.totalorder %s71, %s73
    %p80 = scmp.eq.s32.totalorder %s21, 1
    %p81 = por %p79, %p80
    %p82 = scmp.ne.s32.totalorder %s73, %s74
    %p83 = scmp.eq.s32.totalorder %s21, 0
    %p84 = por %p82, %p83
    %p85 = scmp.ne.s32.totalorder %s73, %s74
    %p86 = scmp.eq.s32.totalorder %s22, 1
    %p87 = por %p85, %p86
    %p89 = scmp.ne.s32.totalorder %s74, %s88
    %p90 = scmp.eq.s32.totalorder %s22, 0
    %p91 = por %p89, %p90
    %s93 = sadd.s32 %s92, 1
    %p96 = scmp.eq.s32.totalorder %s16, 1
    %p97 = scmp.ne.s32.totalorder %s92, %s94
    %p98 = scmp.eq.s32.totalorder %s16, 0
    %p99 = por %p97, %p98
    %p100 = scmp.ne.s32.totalorder %s92, %s94
    %p101 = scmp.eq.s32.totalorder %s21, 1
    %p102 = por %p100, %p101
    %p103 = scmp.ne.s32.totalorder %s94, %s95
    %p104 = scmp.eq.s32.totalorder %s21, 0
    %p105 = por %p103, %p104
    %p106 = scmp.ne.s32.totalorder %s94, %s95
    %p107 = scmp.eq.s32.totalorder %s22, 1
    %p108 = por %p106, %p107
    %p110 = scmp.ne.s32.totalorder %s95, %s109
    %p111 = scmp.eq.s32.totalorder %s22, 0
    %p112 = por %p110, %p111
    %s114 = sadd.s32 %s113, 1
    %p117 = scmp.eq.s32.totalorder %s16, 1
    %p118 = scmp.ne.s32.totalorder %s113, %s115
    %p119 = scmp.eq.s32.totalorder %s16, 0
    %p120 = por %p118, %p119
    %p121 = scmp.ne.s32.totalorder %s113, %s115
    %p122 = scmp.eq.s32.totalorder %s21, 1
    %p123 = por %p121, %p122
    %p124 = scmp.ne.s32.totalorder %s115, %s116
    %p125 = scmp.eq.s32.totalorder %s21, 0
    %p126 = por %p124, %p125
    %p127 = scmp.ne.s32.totalorder %s115, %s116
    %p128 = scmp.eq.s32.totalorder %s22, 1
    %p129 = por %p127, %p128
    %p131 = scmp.ne.s32.totalorder %s116, %s130
    %p132 = scmp.eq.s32.totalorder %s22, 0
    %p133 = por %p131, %p132
    %s135 = sadd.s32 %s134, 1
    %p138 = scmp.eq.s32.totalorder %s16, 1
    %p139 = scmp.ne.s32.totalorder %s134, %s136
    %p140 = scmp.eq.s32.totalorder %s16, 0
    %p141 = por %p139, %p140
    %p142 = scmp.ne.s32.totalorder %s134, %s136
    %p143 = scmp.eq.s32.totalorder %s21, 1
    %p144 = por %p142, %p143
    %p145 = scmp.ne.s32.totalorder %s136, %s137
    %p146 = scmp.eq.s32.totalorder %s21, 0
    %p147 = por %p145, %p146
    %p148 = scmp.ne.s32.totalorder %s136, %s137
    %p149 = scmp.eq.s32.totalorder %s22, 1
    %p150 = por %p148, %p149
    %p152 = scmp.ne.s32.totalorder %s137, %s151
    %p153 = scmp.eq.s32.totalorder %s22, 0
    %p154 = por %p152, %p153
    %s156 = sadd.s32 %s155, 1
    %p159 = scmp.eq.s32.totalorder %s16, 1
    %p160 = scmp.ne.s32.totalorder %s155, %s157
    %p161 = scmp.eq.s32.totalorder %s16, 0
    %p162 = por %p160, %p161
    %p163 = scmp.ne.s32.totalorder %s155, %s157
    %p164 = scmp.eq.s32.totalorder %s21, 1
    %p165 = por %p163, %p164
    %p166 = scmp.ne.s32.totalorder %s157, %s158
    %p167 = scmp.eq.s32.totalorder %s21, 0
    %p168 = por %p166, %p167
    %p169 = scmp.ne.s32.totalorder %s157, %s158
    %p170 = scmp.eq.s32.totalorder %s22, 1
    %p171 = por %p169, %p170
    %p173 = scmp.ne.s32.totalorder %s158, %s172
    %p174 = scmp.eq.s32.totalorder %s22, 0
    %p175 = por %p173, %p174
    %s177 = sadd.s32 %s176, 1
    %p180 = scmp.eq.s32.totalorder %s16, 1
    %p181 = scmp.ne.s32.totalorder %s176, %s178
    %p182 = scmp.eq.s32.totalorder %s16, 0
    %p183 = por %p181, %p182
    %p184 = scmp.ne.s32.totalorder %s176, %s178
    %p185 = scmp.eq.s32.totalorder %s21, 1
    %p186 = por %p184, %p185
    %p187 = scmp.ne.s32.totalorder %s178, %s179
    %p188 = scmp.eq.s32.totalorder %s21, 0
    %p189 = por %p187, %p188
    %p190 = scmp.ne.s32.totalorder %s178, %s179
    %p191 = scmp.eq.s32.totalorder %s22, 1
    %p192 = por %p190, %p191
    %p194 = scmp.ne.s32.totalorder %s179, %s193
    %p195 = scmp.eq.s32.totalorder %s22, 0
    %p196 = por %p194, %p195
    %s198 = sadd.s32 %s197, 1
    %p201 = scmp.eq.s32.totalorder %s16, 1
    %p202 = scmp.ne.s32.totalorder %s197, %s199
    %p203 = scmp.eq.s32.totalorder %s16, 0
    %p204 = por %p202, %p203
    %p205 = scmp.ne.s32.totalorder %s197, %s199
    %p206 = scmp.eq.s32.totalorder %s21, 1
    %p207 = por %p205, %p206
    %p208 = scmp.ne.s32.totalorder %s199, %s200
    %p209 = scmp.eq.s32.totalorder %s21, 0
    %p210 = por %p208, %p209
    %p211 = scmp.ne.s32.totalorder %s199, %s200
    %p212 = scmp.eq.s32.totalorder %s22, 1
    %p213 = por %p211, %p212
    %p215 = scmp.ne.s32.totalorder %s200, %s214
    %p216 = scmp.eq.s32.totalorder %s22, 0
    %p217 = por %p215, %p216
    %s219 = sadd.s32 %s218, 1
    %p222 = scmp.eq.s32.totalorder %s16, 1
    %p223 = scmp.ne.s32.totalorder %s218, %s220
    %p224 = scmp.eq.s32.totalorder %s16, 0
    %p225 = por %p223, %p224
    %p226 = scmp.ne.s32.totalorder %s218, %s220
    %p227 = scmp.eq.s32.totalorder %s21, 1
    %p228 = por %p226, %p227
    %p229 = scmp.ne.s32.totalorder %s220, %s221
    %p230 = scmp.eq.s32.totalorder %s21, 0
    %p231 = por %p229, %p230
    %p232 = scmp.ne.s32.totalorder %s220, %s221
    %p233 = scmp.eq.s32.totalorder %s22, 1
    %p234 = por %p232, %p233
    %p236 = scmp.ne.s32.totalorder %s221, %s235
    %p237 = scmp.eq.s32.totalorder %s22, 0
    %p238 = por %p236, %p237
    %s239 = ssub.s32 %s16, %s23
    %p240 = scmp.eq.s32.totalorder %s239, 0
    %s242 = sadd.s32 %s241, 1
    %s243 = scalar_select %p240, %s241, %s242
    %p246 = pneg %p240
    %p247 = scmp.eq.s32.totalorder %s16, 1
    %p248 = por %p246, %p247
    %p249 = scmp.ne.s32.totalorder %s241, %s244
    %p250 = scmp.eq.s32.totalorder %s16, 0
    %p251 = por %p249, %p250
    %p252 = scmp.ne.s32.totalorder %s241, %s244
    %p253 = scmp.eq.s32.totalorder %s21, 1
    %p254 = por %p252, %p253
    %p255 = scmp.ne.s32.totalorder %s244, %s245
    %p256 = scmp.eq.s32.totalorder %s21, 0
    %p257 = por %p255, %p256
    %p258 = scmp.ne.s32.totalorder %s244, %s245
    %p259 = scmp.eq.s32.totalorder %s22, 1
    %p260 = por %p258, %p259
    %p262 = scmp.ne.s32.totalorder %s245, %s261
    %p263 = scmp.eq.s32.totalorder %s22, 0
    %p264 = por %p262, %p263
    %p265 = scmp.le.s32.totalorder 1, %s16
    %p266 = scmp.lt.s32.totalorder %s16, 3
    %p267 = pnand %p265, %p266
    %p268 = pneg %p267
    // Predicated region
    $region9: #{_lambda_.1} parent=5 // pred_check
      _
    $region10: #{_lambda_.1} parent=5 // pred_check_branch
      %270 = sbr.rel (%p267) target = $region12
    $region11: #{_lambda_.1} parent=5 // pred_region
      %s271 = ssub.s32 %s16, 1
      // Predicated region
      $region13: #{_lambda_.1} parent=11 // pred_check
        %p272 = pneg %p63
      $region14: #{_lambda_.1} parent=11 // pred_check_branch
        %274 = sbr.rel (%p272) target = $region16
      $region15: #{_lambda_.1} parent=11 // pred_region
        _
      $region16: #{_lambda_.1} parent=11 // pred_fallthru
        _
      // Predicated region
      $region17: #{_lambda_.1} parent=11 // pred_check
        %p275 = pneg %p84
      $region18: #{_lambda_.1} parent=11 // pred_check_branch
        %277 = sbr.rel (%p275) target = $region20
      $region19: #{_lambda_.1} parent=11 // pred_region
        _
      $region20: #{_lambda_.1} parent=11 // pred_fallthru
        _
      // Predicated region
      $region21: #{_lambda_.1} parent=11 // pred_check
        %p278 = pneg %p105
      $region22: #{_lambda_.1} parent=11 // pred_check_branch
        %280 = sbr.rel (%p278) target = $region24
      $region23: #{_lambda_.1} parent=11 // pred_region
        _
      $region24: #{_lambda_.1} parent=11 // pred_fallthru
        _
      // Predicated region
      $region25: #{_lambda_.1} parent=11 // pred_check
        %p281 = pneg %p126
      $region26: #{_lambda_.1} parent=11 // pred_check_branch
        %283 = sbr.rel (%p281) target = $region28
      $region27: #{_lambda_.1} parent=11 // pred_region
        _
      $region28: #{_lambda_.1} parent=11 // pred_fallthru
        _
      // Predicated region
      $region29: #{_lambda_.1} parent=11 // pred_check
        %p284 = pneg %p147
      $region30: #{_lambda_.1} parent=11 // pred_check_branch
        %286 = sbr.rel (%p284) target = $region32
      $region31: #{_lambda_.1} parent=11 // pred_region
        _
      $region32: #{_lambda_.1} parent=11 // pred_fallthru
        _
      // Predicated region
      $region33: #{_lambda_.1} parent=11 // pred_check
        %p287 = pneg %p168
      $region34: #{_lambda_.1} parent=11 // pred_check_branch
        %289 = sbr.rel (%p287) target = $region36
      $region35: #{_lambda_.1} parent=11 // pred_region
        _
      $region36: #{_lambda_.1} parent=11 // pred_fallthru
        _
      // Predicated region
      $region37: #{_lambda_.1} parent=11 // pred_check
        %p290 = pneg %p189
      $region38: #{_lambda_.1} parent=11 // pred_check_branch
        %292 = sbr.rel (%p290) target = $region40
      $region39: #{_lambda_.1} parent=11 // pred_region
        _
      $region40: #{_lambda_.1} parent=11 // pred_fallthru
        _
      // Predicated region
      $region41: #{_lambda_.1} parent=11 // pred_check
        %p293 = pneg %p210
      $region42: #{_lambda_.1} parent=11 // pred_check_branch
        %295 = sbr.rel (%p293) target = $region44
      $region43: #{_lambda_.1} parent=11 // pred_region
        _
      $region44: #{_lambda_.1} parent=11 // pred_fallthru
        _
      // Predicated region
      $region45: #{_lambda_.1} parent=11 // pred_check
        %p296 = pneg %p231
      $region46: #{_lambda_.1} parent=11 // pred_check_branch
        %298 = sbr.rel (%p296) target = $region48
      $region47: #{_lambda_.1} parent=11 // pred_region
        _
      $region48: #{_lambda_.1} parent=11 // pred_fallthru
        _
    $region12: #{_lambda_.1} parent=5 // pred_fallthru
      _
    %p299 = scmp.lt.s32.totalorder %s16, 2
    // Predicated region
    $region49: #{_lambda_.1} parent=5 // pred_check
      %p300 = pneg %p299
    $region50: #{_lambda_.1} parent=5 // pred_check_branch
      %302 = sbr.rel (%p300) target = $region52
    $region51: #{_lambda_.1} parent=5 // pred_region
      // Predicated region
      $region53: #{_lambda_.1} parent=51 // pred_check
        %p303 = pneg %p36
      $region54: #{_lambda_.1} parent=51 // pred_check_branch
        %305 = sbr.rel (%p303) target = $region56
      $region55: #{_lambda_.1} parent=51 // pred_region
        %s306 = smul.u32 16, %s16
        %p307 = scmp.lt.s32.totalorder %s306, 31
        %s308 = scalar_select %p307, %s306, 31
        %s309 = smul.addr %s308, 2
        %s310 = smul.addr %s309, 8
        %s311 = scalar_lea.vmem %s0, %s310
        %s312 = smul.u32 16, %s16
      $region56: #{_lambda_.1} parent=51 // pred_fallthru
        _
    $region52: #{_lambda_.1} parent=5 // pred_fallthru
      _
    %p313 = scmp.le.s32.totalorder 1, %s16
    %p314 = scmp.lt.s32.totalorder %s16, 3
    %p315 = pnand %p313, %p314
    %p316 = pneg %p315
    // Predicated region
    $region57: #{_lambda_.1} parent=5 // pred_check
      _
    $region58: #{_lambda_.1} parent=5 // pred_check_branch
      %318 = sbr.rel (%p315) target = $region60
    $region59: #{_lambda_.1} parent=5 // pred_region
      %s319 = ssub.s32 %s16, 1
      %s320 = smul.u32 16, %s21
      %p321 = scmp.lt.s32.totalorder %s320, 31
      %s322 = scalar_select %p321, %s320, 31
      %s323 = smul.addr %s322, 2
      %s324 = smul.addr %s323, 8
      %s325 = scalar_lea.vmem %s0, %s324
      %p326 = pneg %p42
      %p327 = pneg %p39
      %p328 = pneg %p63
      %p329 = pneg %p60
      %p330 = pneg %p84
      %p331 = pneg %p81
      %p332 = pneg %p105
      %p333 = pneg %p102
      %p334 = pneg %p126
      %p335 = pneg %p123
      %p336 = pneg %p147
      %p337 = pneg %p144
      %p338 = pneg %p168
      %p339 = pneg %p165
      %p340 = pneg %p189
      %p341 = pneg %p186
      %p342 = pneg %p210
      %p343 = pneg %p207
      %p344 = pneg %p231
      %p345 = pneg %p228
      %p346 = pneg %p257
      %p347 = pneg %p254
      %s348 = smul.u32 16, %s21
      %p349 = scmp.lt.s32.totalorder %s348, 31
      %s350 = scalar_select %p349, %s348, 31
      %s351 = smul.addr %s350, 4
      %s352 = scalar_lea.vmem %s10, %s351
      %s353 = smul.u32 16, %s21
      %p354 = scmp.lt.s32.totalorder %s353, 31
      %s355 = scalar_select %p354, %s353, 31
      %s356 = smul.addr %s355, 2
      %s357 = smul.addr %s356, 8
      %s358 = scalar_lea.vmem %s0, %s357
      %s359 = smul.u32 16, %s21
      %s360 = smul.u32 16, %s21
      %p361 = scmp.lt.s32.totalorder %s360, 31
      %s362 = scalar_select %p361, %s360, 31
      %s363 = smul.addr %s362, 4
      %s364 = scalar_lea.vmem %s10, %s363
      %s365 = smul.u32 16, %s21
      %v367 = vld [vmem:[%s358] sm:$0xff]
      %v368 = vld [vmem:[%s358 + $0x8] sm:$0xff]
      %v369 = vld [vmem:[%s358 + $0x10] sm:$0xff]
      %v370 = vld [vmem:[%s358 + $0x18] sm:$0xff]
      %v371 = vld [vmem:[%s358 + $0x20] sm:$0xff]
      %v372 = vld [vmem:[%s358 + $0x28] sm:$0xff]
      %v373 = vld [vmem:[%s358 + $0x30] sm:$0xff]
      %v374 = vld [vmem:[%s358 + $0x38] sm:$0xff]
      %v375 = vld [vmem:[%s358 + $0x40] sm:$0xff]
      %v376 = vld [vmem:[%s358 + $0x48] sm:$0xff]
      %v377 = vld [vmem:[%s358 + $0x50] sm:$0xff]
      %v378 = vld [vmem:[%s358 + $0x58] sm:$0xff]
      %v379 = vld [vmem:[%s358 + $0x60] sm:$0xff]
      %v380 = vld [vmem:[%s358 + $0x68] sm:$0xff]
      %v381 = vld [vmem:[%s358 + $0x70] sm:$0xff]
      %v382 = vld [vmem:[%s358 + $0x78] sm:$0xff]
      %v383 = vld [vmem:[%s358 + $0x80] sm:$0xff]
      %v384 = vld [vmem:[%s358 + $0x88] sm:$0xff]
      %v385 = vld [vmem:[%s358 + $0x90] sm:$0xff]
      %v386 = vld [vmem:[%s358 + $0x98] sm:$0xff]
      %v387 = vld [vmem:[%s358 + $0xa0] sm:$0xff]
      %v388 = vld [vmem:[%s358 + $0xa8] sm:$0xff]
      %v389 = vld [vmem:[%s358 + $0xb0] sm:$0xff]
      %v390 = vld [vmem:[%s358 + $0xb8] sm:$0xff]
      %v391 = vld [vmem:[%s358 + $0xc0] sm:$0xff]
      %v392 = vld [vmem:[%s358 + $0xc8] sm:$0xff]
      %v393 = vld [vmem:[%s358 + $0xd0] sm:$0xff]
      %v394 = vld [vmem:[%s358 + $0xd8] sm:$0xff]
      %v395 = vld [vmem:[%s358 + $0xe0] sm:$0xff]
      %v396 = vld [vmem:[%s358 + $0xe8] sm:$0xff]
      %v397 = vld [vmem:[%s358 + $0xf0] sm:$0xff]
      %v398 = vld [vmem:[%s358 + $0xf8] sm:$0xff]
      %v399 = vpack.c.bf16 %v369, %v367
      %v400 = vpack.c.bf16 %v370, %v368
      %v401 = vpack.c.bf16 %v373, %v371
      %v402 = vpack.c.bf16 %v374, %v372
      %v403 = vpack.c.bf16 %v377, %v375
      %v404 = vpack.c.bf16 %v378, %v376
      %v405 = vpack.c.bf16 %v381, %v379
      %v406 = vpack.c.bf16 %v382, %v380
      %v407 = vpack.c.bf16 %v385, %v383
      %v408 = vpack.c.bf16 %v386, %v384
      %v409 = vpack.c.bf16 %v389, %v387
      %v410 = vpack.c.bf16 %v390, %v388
      %v411 = vpack.c.bf16 %v393, %v391
      %v412 = vpack.c.bf16 %v394, %v392
      %v413 = vpack.c.bf16 %v397, %v395
      %v414 = vpack.c.bf16 %v398, %v396
      %v415 = vld [vmem:[%s1] sm:$0xf]
      %v416 = vld [vmem:[%s1 + $0x4] sm:$0xf]
      %v417 = vld [vmem:[%s1 + $0x8] sm:$0xf]
      %v418 = vld [vmem:[%s1 + $0xc] sm:$0xf]
      %v419 = vld [vmem:[%s1 + $0x10] sm:$0xf]
      %v420 = vld [vmem:[%s1 + $0x14] sm:$0xf]
      %v421 = vld [vmem:[%s1 + $0x18] sm:$0xf]
      %v422 = vld [vmem:[%s1 + $0x1c] sm:$0xf]
      %v423 = vld [vmem:[%s1 + $0x20] sm:$0xf]
      %v424 = vld [vmem:[%s1 + $0x24] sm:$0xf]
      %v425 = vld [vmem:[%s1 + $0x28] sm:$0xf]
      %v426 = vld [vmem:[%s1 + $0x2c] sm:$0xf]
      %v427 = vld [vmem:[%s1 + $0x30] sm:$0xf]
      %v428 = vld [vmem:[%s1 + $0x34] sm:$0xf]
      %v429 = vld [vmem:[%s1 + $0x38] sm:$0xf]
      %v430 = vld [vmem:[%s1 + $0x3c] sm:$0xf]
      %v431 = vld [vmem:[%s1 + $0x40] sm:$0xf]
      %v432 = vld [vmem:[%s1 + $0x44] sm:$0xf]
      %v433 = vld [vmem:[%s1 + $0x48] sm:$0xf]
      %v434 = vld [vmem:[%s1 + $0x4c] sm:$0xf]
      %v435 = vld [vmem:[%s6] sm:$0x1]
      %v436 = vlaneseq
      %v437 = vshrl.u32 %v436, 7
      %v438 = vsub.s32 0, %v437
      %v439 = vrot.slane %v435, %v438
      %v460 = vunpack.c.l.b16 %v415
      %v461 = vunpack.c.l.b16 %v416
      %v462 = vunpack.c.l.b16 %v417
      %v463 = vunpack.c.l.b16 %v418
      %v464 = vunpack.c.l.b16 %v419
      %v465 = vunpack.c.l.b16 %v420
      %v466 = vunpack.c.l.b16 %v421
      %v467 = vunpack.c.l.b16 %v422
      %v468 = vunpack.c.l.b16 %v423
      %v469 = vunpack.c.l.b16 %v424
      %v470 = vunpack.c.l.b16 %v425
      %v471 = vunpack.c.l.b16 %v426
      %v472 = vunpack.c.l.b16 %v427
      %v473 = vunpack.c.l.b16 %v428
      %v474 = vunpack.c.l.b16 %v429
      %v475 = vunpack.c.l.b16 %v430
      %v476 = vunpack.c.l.b16 %v431
      %v477 = vunpack.c.l.b16 %v432
      %v478 = vunpack.c.l.b16 %v433
      %v479 = vunpack.c.l.b16 %v434
      %v480 = vpack.c.b16 %v461, %v460
      %v481 = vpack.c.b16 %v463, %v462
      %v482 = vpack.c.b16 %v465, %v464
      %v483 = vpack.c.b16 %v467, %v466
      %v484 = vpack.c.b16 %v469, %v468
      %v485 = vpack.c.b16 %v471, %v470
      %v486 = vpack.c.b16 %v473, %v472
      %v487 = vpack.c.b16 %v475, %v474
      %v488 = vpack.c.b16 %v477, %v476
      %v489 = vpack.c.b16 %v479, %v478
      %vm500 = vcmask 261120
      %v502 = vsel %vm500, %v400, 0
      %v505 = vsel %vm500, %v402, 0
      %v508 = vsel %vm500, %v404, 0
      %v511 = vsel %vm500, %v406, 0
      %v514 = vsel %vm500, %v408, 0
      %v517 = vsel %vm500, %v410, 0
      %v520 = vsel %vm500, %v412, 0
      %v523 = vsel %vm500, %v414, 0
      %525 = vmatprep.subr.bf16.mxu0 0
      %526 = vmatpush1.bf16.msra.mxu0 %v480
      %527 = vmatprep.subr.bf16.mxu0 0
      %528 = vmatpush1.bf16.msra.mxu0 %v481
      %529 = vmatprep.subr.bf16.mxu0 0
      %530 = vmatpush1.bf16.msra.mxu0 %v482
      %531 = vmatprep.subr.bf16.mxu0 0
      %532 = vmatpush1.bf16.msra.mxu0 %v483
      %533 = vmatprep.subr.bf16.mxu0 0
      %534 = vmatpush1.bf16.msra.mxu0 %v484
      %535 = vmatprep.subr.bf16.mxu0 0
      %536 = vmatpush1.bf16.msra.mxu0 %v485
      %537 = vmatprep.subr.bf16.mxu0 0
      %538 = vmatpush1.bf16.msra.mxu0 %v486
      %539 = vmatprep.subr.bf16.mxu0 0
      %540 = vmatpush1.bf16.msra.mxu0 %v487
      %541 = vmatprep.subr.bf16.mxu0 0
      %542 = vmatpush1.bf16.msra.mxu0 %v488
      %543 = vmatprep.subr.bf16.mxu0 0
      %544 = vmatpush1.bf16.msra.mxu0 %v489
      %545 = vmatprep.subr.bf16.mxu0 0
      %546 = vmatpush1.bf16.msra.mxu0 0
      %547 = vmatprep.subr.bf16.mxu0 0
      %548 = vmatpush1.bf16.msra.mxu0 0
      %549 = vmatprep.subr.bf16.mxu0 0
      %550 = vmatpush1.bf16.msra.mxu0 0
      %551 = vmatprep.subr.bf16.mxu0 0
      %552 = vmatpush1.bf16.msra.mxu0 0
      %553 = vmatprep.subr.bf16.mxu0 0
      %554 = vmatpush1.bf16.msra.mxu0 0
      %555 = vmatprep.subr.bf16.mxu0 0
      %556 = vmatpush1.bf16.msra.mxu0 0
      %557 = vmatprep.mubr.bf16.mxu0 %v502
      %558 = vmatmul.mubr.bf16.gmra.mrb[0].mxu0 %v399
      %v559 = vpop.f32.mrb[0].mxu0
      %v560 = vadd.f32 %v439, %v559
      %v561 = vpop.f32.mrb[0].mxu0
      %v562 = vpop.f32.mrb[0].mxu0
      %v563 = vadd.f32 %v439, %v562
      %v564 = vpop.f32.mrb[0].mxu0
      %565 = vmatprep.mubr.bf16.mxu0 %v505
      %566 = vmatmul.mubr.bf16.gmra.mrb[0].mxu0 %v401
      %v567 = vpop.f32.mrb[0].mxu0
      %v568 = vadd.f32 %v439, %v567
      %v569 = vpop.f32.mrb[0].mxu0
      %v570 = vpop.f32.mrb[0].mxu0
      %v571 = vadd.f32 %v439, %v570
      %v572 = vpop.f32.mrb[0].mxu0
      %573 = vmatprep.mubr.bf16.mxu0 %v508
      %574 = vmatmul.mubr.bf16.gmra.mrb[0].mxu0 %v403
      %v575 = vpop.f32.mrb[0].mxu0
      %v576 = vadd.f32 %v439, %v575
      %v577 = vpop.f32.mrb[0].mxu0
      %v578 = vpop.f32.mrb[0].mxu0
      %v579 = vadd.f32 %v439, %v578
      %v580 = vpop.f32.mrb[0].mxu0
      %581 = vmatprep.mubr.bf16.mxu0 %v511
      %582 = vmatmul.mubr.bf16.gmra.mrb[0].mxu0 %v405
      %v583 = vpop.f32.mrb[0].mxu0
      %v584 = vadd.f32 %v439, %v583
      %v585 = vpop.f32.mrb[0].mxu0
      %v586 = vpop.f32.mrb[0].mxu0
      %v587 = vadd.f32 %v439, %v586
      %v588 = vpop.f32.mrb[0].mxu0
      %589 = vmatprep.mubr.bf16.mxu0 %v514
      %590 = vmatmul.mubr.bf16.gmra.mrb[0].mxu0 %v407
      %v591 = vpop.f32.mrb[0].mxu0
      %v592 = vadd.f32 %v439, %v591
      %v593 = vpop.f32.mrb[0].mxu0
      %v594 = vpop.f32.mrb[0].mxu0
      %v595 = vadd.f32 %v439, %v594
      %v596 = vpop.f32.mrb[0].mxu0
      %597 = vmatprep.mubr.bf16.mxu0 %v517
      %598 = vmatmul.mubr.bf16.gmra.mrb[0].mxu0 %v409
      %v599 = vpop.f32.mrb[0].mxu0
      %v600 = vadd.f32 %v439, %v599
      %v601 = vpop.f32.mrb[0].mxu0
      %v602 = vpop.f32.mrb[0].mxu0
      %v603 = vadd.f32 %v439, %v602
      %v604 = vpop.f32.mrb[0].mxu0
      %605 = vmatprep.mubr.bf16.mxu0 %v520
      %606 = vmatmul.mubr.bf16.gmra.mrb[0].mxu0 %v411
      %v607 = vpop.f32.mrb[0].mxu0
      %v608 = vadd.f32 %v439, %v607
      %v609 = vpop.f32.mrb[0].mxu0
      %v610 = vpop.f32.mrb[0].mxu0
      %v611 = vadd.f32 %v439, %v610
      %v612 = vpop.f32.mrb[0].mxu0
      %613 = vmatprep.mubr.bf16.mxu0 %v523
      %614 = vmatmul.mubr.bf16.gmra.mrb[0].mxu0 %v413
      %v615 = vpop.f32.mrb[0].mxu0
      %v616 = vadd.f32 %v439, %v615
      %v617 = vpop.f32.mrb[0].mxu0
      %v618 = vpop.f32.mrb[0].mxu0
      %v619 = vadd.f32 %v439, %v618
      %v620 = vpop.f32.mrb[0].mxu0
      %621 = vdwg.mxu0
      %v622 = vld [vmem:[%s2] sm:$0xf]
      %v623 = vld [vmem:[%s2 + $0x4] sm:$0xf]
      %v624 = vld [vmem:[%s2 + $0x8] sm:$0xf]
      %v625 = vld [vmem:[%s2 + $0xc] sm:$0xf]
      %v626 = vld [vmem:[%s2 + $0x10] sm:$0xf]
      %v627 = vld [vmem:[%s2 + $0x14] sm:$0xf]
      %v628 = vld [vmem:[%s2 + $0x18] sm:$0xf]
      %v629 = vld [vmem:[%s2 + $0x1c] sm:$0xf]
      %v630 = vld [vmem:[%s2 + $0x20] sm:$0xf]
      %v631 = vld [vmem:[%s2 + $0x24] sm:$0xf]
      %v632 = vld [vmem:[%s2 + $0x28] sm:$0xf]
      %v633 = vld [vmem:[%s2 + $0x2c] sm:$0xf]
      %v634 = vld [vmem:[%s2 + $0x30] sm:$0xf]
      %v635 = vld [vmem:[%s2 + $0x34] sm:$0xf]
      %v636 = vld [vmem:[%s2 + $0x38] sm:$0xf]
      %v637 = vld [vmem:[%s2 + $0x3c] sm:$0xf]
      %v638 = vld [vmem:[%s2 + $0x40] sm:$0xf]
      %v639 = vld [vmem:[%s2 + $0x44] sm:$0xf]
      %v640 = vld [vmem:[%s2 + $0x48] sm:$0xf]
      %v641 = vld [vmem:[%s2 + $0x4c] sm:$0xf]
      %v662 = vunpack.c.l.b16 %v622
      %v663 = vunpack.c.l.b16 %v623
      %v664 = vunpack.c.l.b16 %v624
      %v665 = vunpack.c.l.b16 %v625
      %v666 = vunpack.c.l.b16 %v626
      %v667 = vunpack.c.l.b16 %v627
      %v668 = vunpack.c.l.b16 %v628
      %v669 = vunpack.c.l.b16 %v629
      %v670 = vunpack.c.l.b16 %v630
      %v671 = vunpack.c.l.b16 %v631
      %v672 = vunpack.c.l.b16 %v632
      %v673 = vunpack.c.l.b16 %v633
      %v674 = vunpack.c.l.b16 %v634
      %v675 = vunpack.c.l.b16 %v635
      %v676 = vunpack.c.l.b16 %v636
      %v677 = vunpack.c.l.b16 %v637
      %v678 = vunpack.c.l.b16 %v638
      %v679 = vunpack.c.l.b16 %v639
      %v680 = vunpack.c.l.b16 %v640
      %v681 = vunpack.c.l.b16 %v641
      %v682 = vpack.c.b16 %v663, %v662
      %v683 = vpack.c.b16 %v665, %v664
      %v684 = vpack.c.b16 %v667, %v666
      %v685 = vpack.c.b16 %v669, %v668
      %v686 = vpack.c.b16 %v671, %v670
      %v687 = vpack.c.b16 %v673, %v672
      %v688 = vpack.c.b16 %v675, %v674
      %v689 = vpack.c.b16 %v677, %v676
      %v690 = vpack.c.b16 %v679, %v678
      %v691 = vpack.c.b16 %v681, %v680
      %702 = vmatprep.subr.bf16.mxu0 0
      %703 = vmatpush1.bf16.msra.mxu0 %v682
      %704 = vmatprep.subr.bf16.mxu0 0
      %705 = vmatpush1.bf16.msra.mxu0 %v683
      %706 = vmatprep.subr.bf16.mxu0 0
      %707 = vmatpush1.bf16.msra.mxu0 %v684
      %708 = vmatprep.subr.bf16.mxu0 0
      %709 = vmatpush1.bf16.msra.mxu0 %v685
      %710 = vmatprep.subr.bf16.mxu0 0
      %711 = vmatpush1.bf16.msra.mxu0 %v686
      %712 = vmatprep.subr.bf16.mxu0 0
      %713 = vmatpush1.bf16.msra.mxu0 %v687
      %714 = vmatprep.subr.bf16.mxu0 0
      %715 = vmatpush1.bf16.msra.mxu0 %v688
      %716 = vmatprep.subr.bf16.mxu0 0
      %717 = vmatpush1.bf16.msra.mxu0 %v689
      %718 = vmatprep.subr.bf16.mxu0 0
      %719 = vmatpush1.bf16.msra.mxu0 %v690
      %720 = vmatprep.subr.bf16.mxu0 0
      %721 = vmatpush1.bf16.msra.mxu0 %v691
      %722 = vmatprep.subr.bf16.mxu0 0
      %723 = vmatpush1.bf16.msra.mxu0 0
      %724 = vmatprep.subr.bf16.mxu0 0
      %725 = vmatpush1.bf16.msra.mxu0 0
      %726 = vmatprep.subr.bf16.mxu0 0
      %727 = vmatpush1.bf16.msra.mxu0 0
      %728 = vmatprep.subr.bf16.mxu0 0
      %729 = vmatpush1.bf16.msra.mxu0 0
      %730 = vmatprep.subr.bf16.mxu0 0
      %731 = vmatpush1.bf16.msra.mxu0 0
      %732 = vmatprep.subr.bf16.mxu0 0
      %733 = vmatpush1.bf16.msra.mxu0 0
      %734 = vmatprep.mubr.bf16.mxu0 %v502
      %735 = vmatmul.mubr.bf16.gmra.mrb[0].mxu0 %v399
      %v736 = vpop.f32.mrb[0].mxu0
      %v737 = vadd.f32 0.0, %v736
      %v738 = vpop.f32.mrb[0].mxu0
      %v739 = vpop.f32.mrb[0].mxu0
      %v740 = vadd.f32 0.0, %v739
      %v741 = vpop.f32.mrb[0].mxu0
      %742 = vmatprep.mubr.bf16.mxu0 %v505
      %743 = vmatmul.mubr.bf16.gmra.mrb[0].mxu0 %v401
      %v744 = vpop.f32.mrb[0].mxu0
      %v745 = vadd.f32 0.0, %v744
      %v746 = vpop.f32.mrb[0].mxu0
      %v747 = vpop.f32.mrb[0].mxu0
      %v748 = vadd.f32 0.0, %v747
      %v749 = vpop.f32.mrb[0].mxu0
      %750 = vmatprep.mubr.bf16.mxu0 %v508
      %751 = vmatmul.mubr.bf16.gmra.mrb[0].mxu0 %v403
      %v752 = vpop.f32.mrb[0].mxu0
      %v753 = vadd.f32 0.0, %v752
      %v754 = vpop.f32.mrb[0].mxu0
      %v755 = vpop.f32.mrb[0].mxu0
      %v756 = vadd.f32 0.0, %v755
      %v757 = vpop.f32.mrb[0].mxu0
      %758 = vmatprep.mubr.bf16.mxu0 %v511
      %759 = vmatmul.mubr.bf16.gmra.mrb[0].mxu0 %v405
      %v760 = vpop.f32.mrb[0].mxu0
      %v761 = vadd.f32 0.0, %v760
      %v762 = vpop.f32.mrb[0].mxu0
      %v763 = vpop.f32.mrb[0].mxu0
      %v764 = vadd.f32 0.0, %v763
      %v765 = vpop.f32.mrb[0].mxu0
      %766 = vmatprep.mubr.bf16.mxu0 %v514
      %767 = vmatmul.mubr.bf16.gmra.mrb[0].mxu0 %v407
      %v768 = vpop.f32.mrb[0].mxu0
      %v769 = vadd.f32 0.0, %v768
      %v770 = vpop.f32.mrb[0].mxu0
      %v771 = vpop.f32.mrb[0].mxu0
      %v772 = vadd.f32 0.0, %v771
      %v773 = vpop.f32.mrb[0].mxu0
      %774 = vmatprep.mubr.bf16.mxu0 %v517
      %775 = vmatmul.mubr.bf16.gmra.mrb[0].mxu0 %v409
      %v776 = vpop.f32.mrb[0].mxu0
      %v777 = vadd.f32 0.0, %v776
      %v778 = vpop.f32.mrb[0].mxu0
      %v779 = vpop.f32.mrb[0].mxu0
      %v780 = vadd.f32 0.0, %v779
      %v781 = vpop.f32.mrb[0].mxu0
      %782 = vmatprep.mubr.bf16.mxu0 %v520
      %783 = vmatmul.mubr.bf16.gmra.mrb[0].mxu0 %v411
      %v784 = vpop.f32.mrb[0].mxu0
      %v785 = vadd.f32 0.0, %v784
      %v786 = vpop.f32.mrb[0].mxu0
      %v787 = vpop.f32.mrb[0].mxu0
      %v788 = vadd.f32 0.0, %v787
      %v789 = vpop.f32.mrb[0].mxu0
      %790 = vmatprep.mubr.bf16.mxu0 %v523
      %791 = vmatmul.mubr.bf16.gmra.mrb[0].mxu0 %v413
      %v792 = vpop.f32.mrb[0].mxu0
      %v793 = vadd.f32 0.0, %v792
      %v794 = vpop.f32.mrb[0].mxu0
      %v795 = vpop.f32.mrb[0].mxu0
      %v796 = vadd.f32 0.0, %v795
      %v797 = vpop.f32.mrb[0].mxu0
      %798 = vdwg.mxu0
      %v799 = vld [vmem:[%s3] sm:$0xf]
      %v800 = vld [vmem:[%s3 + $0x4] sm:$0xf]
      %v801 = vld [vmem:[%s3 + $0x8] sm:$0xf]
      %v802 = vld [vmem:[%s3 + $0xc] sm:$0xf]
      %v803 = vld [vmem:[%s3 + $0x10] sm:$0xf]
      %v804 = vld [vmem:[%s3 + $0x14] sm:$0xf]
      %v805 = vld [vmem:[%s3 + $0x18] sm:$0xf]
      %v806 = vld [vmem:[%s3 + $0x1c] sm:$0xf]
      %v807 = vld [vmem:[%s3 + $0x20] sm:$0xf]
      %v808 = vld [vmem:[%s3 + $0x24] sm:$0xf]
      %v809 = vld [vmem:[%s3 + $0x28] sm:$0xf]
      %v810 = vld [vmem:[%s3 + $0x2c] sm:$0xf]
      %v811 = vld [vmem:[%s3 + $0x30] sm:$0xf]
      %v812 = vld [vmem:[%s3 + $0x34] sm:$0xf]
      %v813 = vld [vmem:[%s3 + $0x38] sm:$0xf]
      %v814 = vld [vmem:[%s3 + $0x3c] sm:$0xf]
      %v815 = vld [vmem:[%s3 + $0x40] sm:$0xf]
      %v816 = vld [vmem:[%s3 + $0x44] sm:$0xf]
      %v817 = vld [vmem:[%s3 + $0x48] sm:$0xf]
      %v818 = vld [vmem:[%s3 + $0x4c] sm:$0xf]
      %v839 = vunpack.c.l.b16 %v799
      %v840 = vunpack.c.l.b16 %v800
      %v841 = vunpack.c.l.b16 %v801
      %v842 = vunpack.c.l.b16 %v802
      %v843 = vunpack.c.l.b16 %v803
      %v844 = vunpack.c.l.b16 %v804
      %v845 = vunpack.c.l.b16 %v805
      %v846 = vunpack.c.l.b16 %v806
      %v847 = vunpack.c.l.b16 %v807
      %v848 = vunpack.c.l.b16 %v808
      %v849 = vunpack.c.l.b16 %v809
      %v850 = vunpack.c.l.b16 %v810
      %v851 = vunpack.c.l.b16 %v811
      %v852 = vunpack.c.l.b16 %v812
      %v853 = vunpack.c.l.b16 %v813
      %v854 = vunpack.c.l.b16 %v814
      %v855 = vunpack.c.l.b16 %v815
      %v856 = vunpack.c.l.b16 %v816
      %v857 = vunpack.c.l.b16 %v817
      %v858 = vunpack.c.l.b16 %v818
      %v859 = vpack.c.b16 %v840, %v839
      %v860 = vpack.c.b16 %v842, %v841
      %v861 = vpack.c.b16 %v844, %v843
      %v862 = vpack.c.b16 %v846, %v845
      %v863 = vpack.c.b16 %v848, %v847
      %v864 = vpack.c.b16 %v850, %v849
      %v865 = vpack.c.b16 %v852, %v851
      %v866 = vpack.c.b16 %v854, %v853
      %v867 = vpack.c.b16 %v856, %v855
      %v868 = vpack.c.b16 %v858, %v857
      %879 = vmatprep.subr.bf16.mxu0 0
      %880 = vmatpush1.bf16.msra.mxu0 %v859
      %881 = vmatprep.subr.bf16.mxu0 0
      %882 = vmatpush1.bf16.msra.mxu0 %v860
      %883 = vmatprep.subr.bf16.mxu0 0
      %884 = vmatpush1.bf16.msra.mxu0 %v861
      %885 = vmatprep.subr.bf16.mxu0 0
      %886 = vmatpush1.bf16.msra.mxu0 %v862
      %887 = vmatprep.subr.bf16.mxu0 0
      %888 = vmatpush1.bf16.msra.mxu0 %v863
      %889 = vmatprep.subr.bf16.mxu0 0
      %890 = vmatpush1.bf16.msra.mxu0 %v864
      %891 = vmatprep.subr.bf16.mxu0 0
      %892 = vmatpush1.bf16.msra.mxu0 %v865
      %893 = vmatprep.subr.bf16.mxu0 0
      %894 = vmatpush1.bf16.msra.mxu0 %v866
      %895 = vmatprep.subr.bf16.mxu0 0
      %896 = vmatpush1.bf16.msra.mxu0 %v867
      %897 = vmatprep.subr.bf16.mxu0 0
      %898 = vmatpush1.bf16.msra.mxu0 %v868
      %899 = vmatprep.subr.bf16.mxu0 0
      %900 = vmatpush1.bf16.msra.mxu0 0
      %901 = vmatprep.subr.bf16.mxu0 0
      %902 = vmatpush1.bf16.msra.mxu0 0
      %903 = vmatprep.subr.bf16.mxu0 0
      %904 = vmatpush1.bf16.msra.mxu0 0
      %905 = vmatprep.subr.bf16.mxu0 0
      %906 = vmatpush1.bf16.msra.mxu0 0
      %907 = vmatprep.subr.bf16.mxu0 0
      %908 = vmatpush1.bf16.msra.mxu0 0
      %909 = vmatprep.subr.bf16.mxu0 0
      %910 = vmatpush1.bf16.msra.mxu0 0
      %911 = vmatprep.mubr.bf16.mxu0 %v502
      %912 = vmatmul.mubr.bf16.gmra.mrb[0].mxu0 %v399
      %v913 = vpop.f32.mrb[0].mxu0
      %v914 = vadd.f32 0.0, %v913
      %v915 = vpop.f32.mrb[0].mxu0
      %v916 = vpop.f32.mrb[0].mxu0
      %v917 = vadd.f32 0.0, %v916
      %v918 = vpop.f32.mrb[0].mxu0
      %919 = vmatprep.mubr.bf16.mxu0 %v505
      %920 = vmatmul.mubr.bf16.gmra.mrb[0].mxu0 %v401
      %v921 = vpop.f32.mrb[0].mxu0
      %v922 = vadd.f32 0.0, %v921
      %v923 = vpop.f32.mrb[0].mxu0
      %v924 = vpop.f32.mrb[0].mxu0
      %v925 = vadd.f32 0.0, %v924
      %v926 = vpop.f32.mrb[0].mxu0
      %927 = vmatprep.mubr.bf16.mxu0 %v508
      %928 = vmatmul.mubr.bf16.gmra.mrb[0].mxu0 %v403
      %v929 = vpop.f32.mrb[0].mxu0
      %v930 = vadd.f32 0.0, %v929
      %v931 = vpop.f32.mrb[0].mxu0
      %v932 = vpop.f32.mrb[0].mxu0
      %v933 = vadd.f32 0.0, %v932
      %v934 = vpop.f32.mrb[0].mxu0
      %935 = vmatprep.mubr.bf16.mxu0 %v511
      %936 = vmatmul.mubr.bf16.gmra.mrb[0].mxu0 %v405
      %v937 = vpop.f32.mrb[0].mxu0
      %v938 = vadd.f32 0.0, %v937
      %v939 = vpop.f32.mrb[0].mxu0
      %v940 = vpop.f32.mrb[0].mxu0
      %v941 = vadd.f32 0.0, %v940
      %v942 = vpop.f32.mrb[0].mxu0
      %943 = vmatprep.mubr.bf16.mxu0 %v514
      %944 = vmatmul.mubr.bf16.gmra.mrb[0].mxu0 %v407
      %v945 = vpop.f32.mrb[0].mxu0
      %v946 = vadd.f32 0.0, %v945
      %v947 = vpop.f32.mrb[0].mxu0
      %v948 = vpop.f32.mrb[0].mxu0
      %v949 = vadd.f32 0.0, %v948
      %v950 = vpop.f32.mrb[0].mxu0
      %951 = vmatprep.mubr.bf16.mxu0 %v517
      %952 = vmatmul.mubr.bf16.gmra.mrb[0].mxu0 %v409
      %v953 = vpop.f32.mrb[0].mxu0
      %v954 = vadd.f32 0.0, %v953
      %v955 = vpop.f32.mrb[0].mxu0
      %v956 = vpop.f32.mrb[0].mxu0
      %v957 = vadd.f32 0.0, %v956
      %v958 = vpop.f32.mrb[0].mxu0
      %959 = vmatprep.mubr.bf16.mxu0 %v520
      %960 = vmatmul.mubr.bf16.gmra.mrb[0].mxu0 %v411
      %v961 = vpop.f32.mrb[0].mxu0
      %v962 = vadd.f32 0.0, %v961
      %v963 = vpop.f32.mrb[0].mxu0
      %v964 = vpop.f32.mrb[0].mxu0
      %v965 = vadd.f32 0.0, %v964
      %v966 = vpop.f32.mrb[0].mxu0
      %967 = vmatprep.mubr.bf16.mxu0 %v523
      %968 = vmatmul.mubr.bf16.gmra.mrb[0].mxu0 %v413
      %v969 = vpop.f32.mrb[0].mxu0
      %v970 = vadd.f32 0.0, %v969
      %v971 = vpop.f32.mrb[0].mxu0
      %v972 = vpop.f32.mrb[0].mxu0
      %v973 = vadd.f32 0.0, %v972
      %v974 = vpop.f32.mrb[0].mxu0
      %975 = vdwg.mxu0
      %v976 = vpack.c.bf16 %v917, %v914
      %v977 = vpack.c.bf16 %v925, %v922
      %v978 = vpack.c.bf16 %v933, %v930
      %v979 = vpack.c.bf16 %v941, %v938
      %v980 = vpack.c.bf16 %v949, %v946
      %v981 = vpack.c.bf16 %v957, %v954
      %v982 = vpack.c.bf16 %v965, %v962
      %v983 = vpack.c.bf16 %v973, %v970
      %v984 = vmax.f32 %v560, 0.0
      %v985 = vmax.f32 %v563, 0.0
      %v986 = vmax.f32 %v568, 0.0
      %v987 = vmax.f32 %v571, 0.0
      %v988 = vmax.f32 %v576, 0.0
      %v989 = vmax.f32 %v579, 0.0
      %v990 = vmax.f32 %v584, 0.0
      %v991 = vmax.f32 %v587, 0.0
      %v992 = vmax.f32 %v592, 0.0
      %v993 = vmax.f32 %v595, 0.0
      %v994 = vmax.f32 %v600, 0.0
      %v995 = vmax.f32 %v603, 0.0
      %v996 = vmax.f32 %v608, 0.0
      %v997 = vmax.f32 %v611, 0.0
      %v998 = vmax.f32 %v616, 0.0
      %v999 = vmax.f32 %v619, 0.0
      %v1000 = vpack.c.bf16 %v985, %v984
      %v1001 = vpack.c.bf16 %v987, %v986
      %v1002 = vpack.c.bf16 %v989, %v988
      %v1003 = vpack.c.bf16 %v991, %v990
      %v1004 = vpack.c.bf16 %v993, %v992
      %v1005 = vpack.c.bf16 %v995, %v994
      %v1006 = vpack.c.bf16 %v997, %v996
      %v1007 = vpack.c.bf16 %v999, %v998
      %v1008 = vld [vmem:[%s4] sm:$0xf]
      %v1009 = vld [vmem:[%s4 + $0x4] sm:$0xf]
      %v1010 = vld [vmem:[%s4 + $0x8] sm:$0xf]
      %v1011 = vld [vmem:[%s4 + $0xc] sm:$0xf]
      %v1012 = vld [vmem:[%s4 + $0x10] sm:$0xf]
      %v1013 = vld [vmem:[%s4 + $0x14] sm:$0xf]
      %v1014 = vld [vmem:[%s4 + $0x18] sm:$0xf]
      %v1015 = vld [vmem:[%s4 + $0x1c] sm:$0xf]
      %v1016 = vld [vmem:[%s4 + $0x20] sm:$0xf]
      %v1017 = vld [vmem:[%s4 + $0x24] sm:$0xf]
      %v1018 = vld [vmem:[%s4 + $0x28] sm:$0xf]
      %v1019 = vld [vmem:[%s4 + $0x2c] sm:$0xf]
      %v1020 = vld [vmem:[%s4 + $0x30] sm:$0xf]
      %v1021 = vld [vmem:[%s4 + $0x34] sm:$0xf]
      %v1022 = vld [vmem:[%s4 + $0x38] sm:$0xf]
      %v1023 = vld [vmem:[%s4 + $0x3c] sm:$0xf]
      %v1024 = vld [vmem:[%s6 + $0x1] sm:$0x1]
      %v1025 = vlaneseq
      %v1026 = vshrl.u32 %v1025, 7
      %v1027 = vsub.s32 0, %v1026
      %v1028 = vrot.slane %v1024, %v1027
      %v1045 = vunpack.c.l.b16 %v1008
      %v1046 = vunpack.c.l.b16 %v1009
      %v1047 = vunpack.c.l.b16 %v1010
      %v1048 = vunpack.c.l.b16 %v1011
      %v1049 = vunpack.c.l.b16 %v1012
      %v1050 = vunpack.c.l.b16 %v1013
      %v1051 = vunpack.c.l.b16 %v1014
      %v1052 = vunpack.c.l.b16 %v1015
      %v1053 = vunpack.c.l.b16 %v1016
      %v1054 = vunpack.c.l.b16 %v1017
      %v1055 = vunpack.c.l.b16 %v1018
      %v1056 = vunpack.c.l.b16 %v1019
      %v1057 = vunpack.c.l.b16 %v1020
      %v1058 = vunpack.c.l.b16 %v1021
      %v1059 = vunpack.c.l.b16 %v1022
      %v1060 = vunpack.c.l.b16 %v1023
      %v1061 = vpack.c.b16 %v1046, %v1045
      %v1062 = vpack.c.b16 %v1048, %v1047
      %v1063 = vpack.c.b16 %v1050, %v1049
      %v1064 = vpack.c.b16 %v1052, %v1051
      %v1065 = vpack.c.b16 %v1054, %v1053
      %v1066 = vpack.c.b16 %v1056, %v1055
      %v1067 = vpack.c.b16 %v1058, %v1057
      %v1068 = vpack.c.b16 %v1060, %v1059
      %1077 = vmatprep.subr.bf16.mxu0 0
      %1078 = vmatpush1.bf16.msra.mxu0 %v1061
      %1079 = vmatprep.subr.bf16.mxu0 0
      %1080 = vmatpush1.bf16.msra.mxu0 %v1062
      %1081 = vmatprep.subr.bf16.mxu0 0
      %1082 = vmatpush1.bf16.msra.mxu0 %v1063
      %1083 = vmatprep.subr.bf16.mxu0 0
      %1084 = vmatpush1.bf16.msra.mxu0 %v1064
      %1085 = vmatprep.subr.bf16.mxu0 0
      %1086 = vmatpush1.bf16.msra.mxu0 %v1065
      %1087 = vmatprep.subr.bf16.mxu0 0
      %1088 = vmatpush1.bf16.msra.mxu0 %v1066
      %1089 = vmatprep.subr.bf16.mxu0 0
      %1090 = vmatpush1.bf16.msra.mxu0 %v1067
      %1091 = vmatprep.subr.bf16.mxu0 0
      %1092 = vmatpush1.bf16.msra.mxu0 %v1068
      %1093 = vmatprep.subr.bf16.mxu0 0
      %1094 = vmatpush1.bf16.msra.mxu0 0
      %1095 = vmatprep.subr.bf16.mxu0 0
      %1096 = vmatpush1.bf16.msra.mxu0 0
      %1097 = vmatprep.subr.bf16.mxu0 0
      %1098 = vmatpush1.bf16.msra.mxu0 0
      %1099 = vmatprep.subr.bf16.mxu0 0
      %1100 = vmatpush1.bf16.msra.mxu0 0
      %1101 = vmatprep.subr.bf16.mxu0 0
      %1102 = vmatpush1.bf16.msra.mxu0 0
      %1103 = vmatprep.subr.bf16.mxu0 0
      %1104 = vmatpush1.bf16.msra.mxu0 0
      %1105 = vmatprep.subr.bf16.mxu0 0
      %1106 = vmatpush1.bf16.msra.mxu0 0
      %1107 = vmatprep.subr.bf16.mxu0 0
      %1108 = vmatpush1.bf16.msra.mxu0 0
      %1109 = vmatprep.mubr.bf16.mxu0 0
      %1110 = vmatmul.mubr.bf16.gmra.mrb[0].mxu0 %v1000
      %v1111 = vpop.f32.mrb[0].mxu0
      %v1112 = vadd.f32 %v1028, %v1111
      %v1113 = vpop.f32.mrb[0].mxu0
      %v1114 = vpop.f32.mrb[0].mxu0
      %v1115 = vadd.f32 %v1028, %v1114
      %v1116 = vpop.f32.mrb[0].mxu0
      %1117 = vmatprep.mubr.bf16.mxu0 0
      %1118 = vmatmul.mubr.bf16.gmra.mrb[0].mxu0 %v1001
      %v1119 = vpop.f32.mrb[0].mxu0
      %v1120 = vadd.f32 %v1028, %v1119
      %v1121 = vpop.f32.mrb[0].mxu0
      %v1122 = vpop.f32.mrb[0].mxu0
      %v1123 = vadd.f32 %v1028, %v1122
      %v1124 = vpop.f32.mrb[0].mxu0
      %1125 = vmatprep.mubr.bf16.mxu0 0
      %1126 = vmatmul.mubr.bf16.gmra.mrb[0].mxu0 %v1002
      %v1127 = vpop.f32.mrb[0].mxu0
      %v1128 = vadd.f32 %v1028, %v1127
      %v1129 = vpop.f32.mrb[0].mxu0
      %v1130 = vpop.f32.mrb[0].mxu0
      %v1131 = vadd.f32 %v1028, %v1130
      %v1132 = vpop.f32.mrb[0].mxu0
      %1133 = vmatprep.mubr.bf16.mxu0 0
      %1134 = vmatmul.mubr.bf16.gmra.mrb[0].mxu0 %v1003
      %v1135 = vpop.f32.mrb[0].mxu0
      %v1136 = vadd.f32 %v1028, %v1135
      %v1137 = vpop.f32.mrb[0].mxu0
      %v1138 = vpop.f32.mrb[0].mxu0
      %v1139 = vadd.f32 %v1028, %v1138
      %v1140 = vpop.f32.mrb[0].mxu0
      %1141 = vmatprep.mubr.bf16.mxu0 0
      %1142 = vmatmul.mubr.bf16.gmra.mrb[0].mxu0 %v1004
      %v1143 = vpop.f32.mrb[0].mxu0
      %v1144 = vadd.f32 %v1028, %v1143
      %v1145 = vpop.f32.mrb[0].mxu0
      %v1146 = vpop.f32.mrb[0].mxu0
      %v1147 = vadd.f32 %v1028, %v1146
      %v1148 = vpop.f32.mrb[0].mxu0
      %1149 = vmatprep.mubr.bf16.mxu0 0
      %1150 = vmatmul.mubr.bf16.gmra.mrb[0].mxu0 %v1005
      %v1151 = vpop.f32.mrb[0].mxu0
      %v1152 = vadd.f32 %v1028, %v1151
      %v1153 = vpop.f32.mrb[0].mxu0
      %v1154 = vpop.f32.mrb[0].mxu0
      %v1155 = vadd.f32 %v1028, %v1154
      %v1156 = vpop.f32.mrb[0].mxu0
      %1157 = vmatprep.mubr.bf16.mxu0 0
      %1158 = vmatmul.mubr.bf16.gmra.mrb[0].mxu0 %v1006
      %v1159 = vpop.f32.mrb[0].mxu0
      %v1160 = vadd.f32 %v1028, %v1159
      %v1161 = vpop.f32.mrb[0].mxu0
      %v1162 = vpop.f32.mrb[0].mxu0
      %v1163 = vadd.f32 %v1028, %v1162
      %v1164 = vpop.f32.mrb[0].mxu0
      %1165 = vmatprep.mubr.bf16.mxu0 0
      %1166 = vmatmul.mubr.bf16.gmra.mrb[0].mxu0 %v1007
      %v1167 = vpop.f32.mrb[0].mxu0
      %v1168 = vadd.f32 %v1028, %v1167
      %v1169 = vpop.f32.mrb[0].mxu0
      %v1170 = vpop.f32.mrb[0].mxu0
      %v1171 = vadd.f32 %v1028, %v1170
      %v1172 = vpop.f32.mrb[0].mxu0
      %1173 = vdwg.mxu0
      %v1174 = vmax.f32 %v1112, 0.0
      %v1175 = vmax.f32 %v1115, 0.0
      %v1176 = vmax.f32 %v1120, 0.0
      %v1177 = vmax.f32 %v1123, 0.0
      %v1178 = vmax.f32 %v1128, 0.0
      %v1179 = vmax.f32 %v1131, 0.0
      %v1180 = vmax.f32 %v1136, 0.0
      %v1181 = vmax.f32 %v1139, 0.0
      %v1182 = vmax.f32 %v1144, 0.0
      %v1183 = vmax.f32 %v1147, 0.0
      %v1184 = vmax.f32 %v1152, 0.0
      %v1185 = vmax.f32 %v1155, 0.0
      %v1186 = vmax.f32 %v1160, 0.0
      %v1187 = vmax.f32 %v1163, 0.0
      %v1188 = vmax.f32 %v1168, 0.0
      %v1189 = vmax.f32 %v1171, 0.0
      %v1190 = vpack.c.bf16 %v1175, %v1174
      %v1191 = vpack.c.bf16 %v1177, %v1176
      %v1192 = vpack.c.bf16 %v1179, %v1178
      %v1193 = vpack.c.bf16 %v1181, %v1180
      %v1194 = vpack.c.bf16 %v1183, %v1182
      %v1195 = vpack.c.bf16 %v1185, %v1184
      %v1196 = vpack.c.bf16 %v1187, %v1186
      %v1197 = vpack.c.bf16 %v1189, %v1188
      %s1198 = scalar_lea.vmem %s4, 64
      %v1199 = vld [vmem:[%s1198] sm:$0xf]
      %v1200 = vld [vmem:[%s1198 + $0x4] sm:$0xf]
      %v1201 = vld [vmem:[%s1198 + $0x8] sm:$0xf]
      %v1202 = vld [vmem:[%s1198 + $0xc] sm:$0xf]
      %v1203 = vld [vmem:[%s1198 + $0x10] sm:$0xf]
      %v1204 = vld [vmem:[%s1198 + $0x14] sm:$0xf]
      %v1205 = vld [vmem:[%s1198 + $0x18] sm:$0xf]
      %v1206 = vld [vmem:[%s1198 + $0x1c] sm:$0xf]
      %v1207 = vld [vmem:[%s1198 + $0x20] sm:$0xf]
      %v1208 = vld [vmem:[%s1198 + $0x24] sm:$0xf]
      %v1209 = vld [vmem:[%s1198 + $0x28] sm:$0xf]
      %v1210 = vld [vmem:[%s1198 + $0x2c] sm:$0xf]
      %v1211 = vld [vmem:[%s1198 + $0x30] sm:$0xf]
      %v1212 = vld [vmem:[%s1198 + $0x34] sm:$0xf]
      %v1213 = vld [vmem:[%s1198 + $0x38] sm:$0xf]
      %v1214 = vld [vmem:[%s1198 + $0x3c] sm:$0xf]
      %v1215 = vld [vmem:[%s5] sm:$0xf]
      %v1216 = vld [vmem:[%s5 + $0x4] sm:$0xf]
      %v1217 = vld [vmem:[%s5 + $0x8] sm:$0xf]
      %v1218 = vld [vmem:[%s5 + $0xc] sm:$0xf]
      %v1223 = vunpack.c.l.b16 %v1215
      %v1224 = vunpack.c.l.b16 %v1216
      %v1225 = vunpack.c.l.b16 %v1217
      %v1226 = vunpack.c.l.b16 %v1218
      %v1227 = vpack.c.b16 %v1224, %v1223
      %v1228 = vpack.c.b16 %v1226, %v1225
      %v1232 = vsel %vm500, %v976, 0
      %v1235 = vsel %vm500, %v977, 0
      %v1238 = vsel %vm500, %v978, 0
      %v1241 = vsel %vm500, %v979, 0
      %v1244 = vsel %vm500, %v980, 0
      %v1247 = vsel %vm500, %v981, 0
      %v1250 = vsel %vm500, %v982, 0
      %v1253 = vsel %vm500, %v983, 0
      %1255 = vmatprep.subr.bf16.mxu0 0
      %1256 = vmatpush1.bf16.msra.mxu0 %v1227
      %1257 = vmatprep.subr.bf16.mxu0 0
      %1258 = vmatpush1.bf16.msra.mxu0 %v1228
      %1259 = vmatprep.subr.bf16.mxu0 0
      %1260 = vmatpush1.bf16.msra.mxu0 0
      %1261 = vmatprep.subr.bf16.mxu0 0
      %1262 = vmatpush1.bf16.msra.mxu0 0
      %1263 = vmatprep.subr.bf16.mxu0 0
      %1264 = vmatpush1.bf16.msra.mxu0 0
      %1265 = vmatprep.subr.bf16.mxu0 0
      %1266 = vmatpush1.bf16.msra.mxu0 0
      %1267 = vmatprep.subr.bf16.mxu0 0
      %1268 = vmatpush1.bf16.msra.mxu0 0
      %1269 = vmatprep.subr.bf16.mxu0 0
      %1270 = vmatpush1.bf16.msra.mxu0 0
      %1271 = vmatprep.subr.bf16.mxu0 0
      %1272 = vmatpush1.bf16.msra.mxu0 0
      %1273 = vmatprep.subr.bf16.mxu0 0
      %1274 = vmatpush1.bf16.msra.mxu0 0
      %1275 = vmatprep.subr.bf16.mxu0 0
      %1276 = vmatpush1.bf16.msra.mxu0 0
      %1277 = vmatprep.subr.bf16.mxu0 0
      %1278 = vmatpush1.bf16.msra.mxu0 0
      %1279 = vmatprep.subr.bf16.mxu0 0
      %1280 = vmatpush1.bf16.msra.mxu0 0
      %1281 = vmatprep.subr.bf16.mxu0 0
      %1282 = vmatpush1.bf16.msra.mxu0 0
      %1283 = vmatprep.subr.bf16.mxu0 0
      %1284 = vmatpush1.bf16.msra.mxu0 0
      %1285 = vmatprep.subr.bf16.mxu0 0
      %1286 = vmatpush1.bf16.msra.mxu0 0
      %1287 = vmatprep.mubr.bf16.mxu0 0
      %1288 = vmatmul.mubr.bf16.gmra.mrb[0].mxu0 %v1232
      %v1289 = vpop.f32.mrb[0].mxu0
      %v1290 = vadd.f32 0.0, %v1289
      %v1291 = vpop.f32.mrb[0].mxu0
      %v1292 = vpop.f32.mrb[0].mxu0
      %v1293 = vadd.f32 0.0, %v1292
      %v1294 = vpop.f32.mrb[0].mxu0
      %1295 = vmatprep.mubr.bf16.mxu0 0
      %1296 = vmatmul.mubr.bf16.gmra.mrb[0].mxu0 %v1235
      %v1297 = vpop.f32.mrb[0].mxu0
      %v1298 = vadd.f32 0.0, %v1297
      %v1299 = vpop.f32.mrb[0].mxu0
      %v1300 = vpop.f32.mrb[0].mxu0
      %v1301 = vadd.f32 0.0, %v1300
      %v1302 = vpop.f32.mrb[0].mxu0
      %1303 = vmatprep.mubr.bf16.mxu0 0
      %1304 = vmatmul.mubr.bf16.gmra.mrb[0].mxu0 %v1238
      %v1305 = vpop.f32.mrb[0].mxu0
      %v1306 = vadd.f32 0.0, %v1305
      %v1307 = vpop.f32.mrb[0].mxu0
      %v1308 = vpop.f32.mrb[0].mxu0
      %v1309 = vadd.f32 0.0, %v1308
      %v1310 = vpop.f32.mrb[0].mxu0
      %1311 = vmatprep.mubr.bf16.mxu0 0
      %1312 = vmatmul.mubr.bf16.gmra.mrb[0].mxu0 %v1241
      %v1313 = vpop.f32.mrb[0].mxu0
      %v1314 = vadd.f32 0.0, %v1313
      %v1315 = vpop.f32.mrb[0].mxu0
      %v1316 = vpop.f32.mrb[0].mxu0
      %v1317 = vadd.f32 0.0, %v1316
      %v1318 = vpop.f32.mrb[0].mxu0
      %1319 = vmatprep.mubr.bf16.mxu0 0
      %1320 = vmatmul.mubr.bf16.gmra.mrb[0].mxu0 %v1244
      %v1321 = vpop.f32.mrb[0].mxu0
      %v1322 = vadd.f32 0.0, %v1321
      %v1323 = vpop.f32.mrb[0].mxu0
      %v1324 = vpop.f32.mrb[0].mxu0
      %v1325 = vadd.f32 0.0, %v1324
      %v1326 = vpop.f32.mrb[0].mxu0
      %1327 = vmatprep.mubr.bf16.mxu0 0
      %1328 = vmatmul.mubr.bf16.gmra.mrb[0].mxu0 %v1247
      %v1329 = vpop.f32.mrb[0].mxu0
      %v1330 = vadd.f32 0.0, %v1329
      %v1331 = vpop.f32.mrb[0].mxu0
      %v1332 = vpop.f32.mrb[0].mxu0
      %v1333 = vadd.f32 0.0, %v1332
      %v1334 = vpop.f32.mrb[0].mxu0
      %1335 = vmatprep.mubr.bf16.mxu0 0
      %1336 = vmatmul.mubr.bf16.gmra.mrb[0].mxu0 %v1250
      %v1337 = vpop.f32.mrb[0].mxu0
      %v1338 = vadd.f32 0.0, %v1337
      %v1339 = vpop.f32.mrb[0].mxu0
      %v1340 = vpop.f32.mrb[0].mxu0
      %v1341 = vadd.f32 0.0, %v1340
      %v1342 = vpop.f32.mrb[0].mxu0
      %1343 = vmatprep.mubr.bf16.mxu0 0
      %1344 = vmatmul.mubr.bf16.gmra.mrb[0].mxu0 %v1253
      %v1345 = vpop.f32.mrb[0].mxu0
      %v1346 = vadd.f32 0.0, %v1345
      %v1347 = vpop.f32.mrb[0].mxu0
      %v1348 = vpop.f32.mrb[0].mxu0
      %v1349 = vadd.f32 0.0, %v1348
      %v1350 = vpop.f32.mrb[0].mxu0
      %1351 = vdwg.mxu0
      %v1368 = vunpack.c.l.b16 %v1199
      %v1369 = vunpack.c.l.b16 %v1200
      %v1370 = vunpack.c.l.b16 %v1201
      %v1371 = vunpack.c.l.b16 %v1202
      %v1372 = vunpack.c.l.b16 %v1203
      %v1373 = vunpack.c.l.b16 %v1204
      %v1374 = vunpack.c.l.b16 %v1205
      %v1375 = vunpack.c.l.b16 %v1206
      %v1376 = vunpack.c.l.b16 %v1207
      %v1377 = vunpack.c.l.b16 %v1208
      %v1378 = vunpack.c.l.b16 %v1209
      %v1379 = vunpack.c.l.b16 %v1210
      %v1380 = vunpack.c.l.b16 %v1211
      %v1381 = vunpack.c.l.b16 %v1212
      %v1382 = vunpack.c.l.b16 %v1213
      %v1383 = vunpack.c.l.b16 %v1214
      %v1384 = vpack.c.b16 %v1369, %v1368
      %v1385 = vpack.c.b16 %v1371, %v1370
      %v1386 = vpack.c.b16 %v1373, %v1372
      %v1387 = vpack.c.b16 %v1375, %v1374
      %v1388 = vpack.c.b16 %v1377, %v1376
      %v1389 = vpack.c.b16 %v1379, %v1378
      %v1390 = vpack.c.b16 %v1381, %v1380
      %v1391 = vpack.c.b16 %v1383, %v1382
      %1400 = vmatprep.subr.bf16.mxu0 0
      %1401 = vmatpush1.bf16.msra.mxu0 %v1384
      %1402 = vmatprep.subr.bf16.mxu0 0
      %1403 = vmatpush1.bf16.msra.mxu0 %v1385
      %1404 = vmatprep.subr.bf16.mxu0 0
      %1405 = vmatpush1.bf16.msra.mxu0 %v1386
      %1406 = vmatprep.subr.bf16.mxu0 0
      %1407 = vmatpush1.bf16.msra.mxu0 %v1387
      %1408 = vmatprep.subr.bf16.mxu0 0
      %1409 = vmatpush1.bf16.msra.mxu0 %v1388
      %1410 = vmatprep.subr.bf16.mxu0 0
      %1411 = vmatpush1.bf16.msra.mxu0 %v1389
      %1412 = vmatprep.subr.bf16.mxu0 0
      %1413 = vmatpush1.bf16.msra.mxu0 %v1390
      %1414 = vmatprep.subr.bf16.mxu0 0
      %1415 = vmatpush1.bf16.msra.mxu0 %v1391
      %1416 = vmatprep.subr.bf16.mxu0 0
      %1417 = vmatpush1.bf16.msra.mxu0 0
      %1418 = vmatprep.subr.bf16.mxu0 0
      %1419 = vmatpush1.bf16.msra.mxu0 0
      %1420 = vmatprep.subr.bf16.mxu0 0
      %1421 = vmatpush1.bf16.msra.mxu0 0
      %1422 = vmatprep.subr.bf16.mxu0 0
      %1423 = vmatpush1.bf16.msra.mxu0 0
      %1424 = vmatprep.subr.bf16.mxu0 0
      %1425 = vmatpush1.bf16.msra.mxu0 0
      %1426 = vmatprep.subr.bf16.mxu0 0
      %1427 = vmatpush1.bf16.msra.mxu0 0
      %1428 = vmatprep.subr.bf16.mxu0 0
      %1429 = vmatpush1.bf16.msra.mxu0 0
      %1430 = vmatprep.subr.bf16.mxu0 0
      %1431 = vmatpush1.bf16.msra.mxu0 0
      %1432 = vmatprep.mubr.bf16.mxu0 0
      %1433 = vmatmul.mubr.bf16.gmra.mrb[0].mxu0 %v1190
      %v1434 = vpop.f32.mrb[0].mxu0
      %v1435 = vadd.f32 %v1290, %v1434
      %v1436 = vpop.f32.mrb[0].mxu0
      %v1437 = vpop.f32.mrb[0].mxu0
      %v1438 = vadd.f32 %v1293, %v1437
      %v1439 = vpop.f32.mrb[0].mxu0
      %1440 = vmatprep.mubr.bf16.mxu0 0
      %1441 = vmatmul.mubr.bf16.gmra.mrb[0].mxu0 %v1191
      %v1442 = vpop.f32.mrb[0].mxu0
      %v1443 = vadd.f32 %v1298, %v1442
      %v1444 = vpop.f32.mrb[0].mxu0
      %v1445 = vpop.f32.mrb[0].mxu0
      %v1446 = vadd.f32 %v1301, %v1445
      %v1447 = vpop.f32.mrb[0].mxu0
      %1448 = vmatprep.mubr.bf16.mxu0 0
      %1449 = vmatmul.mubr.bf16.gmra.mrb[0].mxu0 %v1192
      %v1450 = vpop.f32.mrb[0].mxu0
      %v1451 = vadd.f32 %v1306, %v1450
      %v1452 = vpop.f32.mrb[0].mxu0
      %v1453 = vpop.f32.mrb[0].mxu0
      %v1454 = vadd.f32 %v1309, %v1453
      %v1455 = vpop.f32.mrb[0].mxu0
      %1456 = vmatprep.mubr.bf16.mxu0 0
      %1457 = vmatmul.mubr.bf16.gmra.mrb[0].mxu0 %v1193
      %v1458 = vpop.f32.mrb[0].mxu0
      %v1459 = vadd.f32 %v1314, %v1458
      %v1460 = vpop.f32.mrb[0].mxu0
      %v1461 = vpop.f32.mrb[0].mxu0
      %v1462 = vadd.f32 %v1317, %v1461
      %v1463 = vpop.f32.mrb[0].mxu0
      %1464 = vmatprep.mubr.bf16.mxu0 0
      %1465 = vmatmul.mubr.bf16.gmra.mrb[0].mxu0 %v1194
      %v1466 = vpop.f32.mrb[0].mxu0
      %v1467 = vadd.f32 %v1322, %v1466
      %v1468 = vpop.f32.mrb[0].mxu0
      %v1469 = vpop.f32.mrb[0].mxu0
      %v1470 = vadd.f32 %v1325, %v1469
      %v1471 = vpop.f32.mrb[0].mxu0
      %1472 = vmatprep.mubr.bf16.mxu0 0
      %1473 = vmatmul.mubr.bf16.gmra.mrb[0].mxu0 %v1195
      %v1474 = vpop.f32.mrb[0].mxu0
      %v1475 = vadd.f32 %v1330, %v1474
      %v1476 = vpop.f32.mrb[0].mxu0
      %v1477 = vpop.f32.mrb[0].mxu0
      %v1478 = vadd.f32 %v1333, %v1477
      %v1479 = vpop.f32.mrb[0].mxu0
      %1480 = vmatprep.mubr.bf16.mxu0 0
      %1481 = vmatmul.mubr.bf16.gmra.mrb[0].mxu0 %v1196
      %v1482 = vpop.f32.mrb[0].mxu0
      %v1483 = vadd.f32 %v1338, %v1482
      %v1484 = vpop.f32.mrb[0].mxu0
      %v1485 = vpop.f32.mrb[0].mxu0
      %v1486 = vadd.f32 %v1341, %v1485
      %v1487 = vpop.f32.mrb[0].mxu0
      %1488 = vmatprep.mubr.bf16.mxu0 0
      %1489 = vmatmul.mubr.bf16.gmra.mrb[0].mxu0 %v1197
      %v1490 = vpop.f32.mrb[0].mxu0
      %v1491 = vadd.f32 %v1346, %v1490
      %v1492 = vpop.f32.mrb[0].mxu0
      %v1493 = vpop.f32.mrb[0].mxu0
      %v1494 = vadd.f32 %v1349, %v1493
      %v1495 = vpop.f32.mrb[0].mxu0
      %1496 = vdwg.mxu0
      %v1497 = vld [vmem:[%s6 + $0x2] sm:$0x1]
      %v1498 = vlaneseq
      %v1499 = vshrl.u32 %v1498, 7
      %v1500 = vsub.s32 0, %v1499
      %v1501 = vrot.slane %v1497, %v1500
      %v1502 = vadd.f32 %v1435, %v1501
      %v1503 = vadd.f32 %v1438, %v1501
      %v1504 = vadd.f32 %v1443, %v1501
      %v1505 = vadd.f32 %v1446, %v1501
      %v1506 = vadd.f32 %v1451, %v1501
      %v1507 = vadd.f32 %v1454, %v1501
      %v1508 = vadd.f32 %v1459, %v1501
      %v1509 = vadd.f32 %v1462, %v1501
      %v1510 = vadd.f32 %v1467, %v1501
      %v1511 = vadd.f32 %v1470, %v1501
      %v1512 = vadd.f32 %v1475, %v1501
      %v1513 = vadd.f32 %v1478, %v1501
      %v1514 = vadd.f32 %v1483, %v1501
      %v1515 = vadd.f32 %v1486, %v1501
      %v1516 = vadd.f32 %v1491, %v1501
      %v1517 = vadd.f32 %v1494, %v1501
      %v1518 = vadd.f32 %v1502, %v737
      %v1519 = vadd.f32 %v1503, %v740
      %v1520 = vadd.f32 %v1504, %v745
      %v1521 = vadd.f32 %v1505, %v748
      %v1522 = vadd.f32 %v1506, %v753
      %v1523 = vadd.f32 %v1507, %v756
      %v1524 = vadd.f32 %v1508, %v761
      %v1525 = vadd.f32 %v1509, %v764
      %v1526 = vadd.f32 %v1510, %v769
      %v1527 = vadd.f32 %v1511, %v772
      %v1528 = vadd.f32 %v1512, %v777
      %v1529 = vadd.f32 %v1513, %v780
      %v1530 = vadd.f32 %v1514, %v785
      %v1531 = vadd.f32 %v1515, %v788
      %v1532 = vadd.f32 %v1516, %v793
      %v1533 = vadd.f32 %v1517, %v796
      %v1534 = vld [vmem:[%s9] sm:$0xff]
      %v1535 = vld [vmem:[%s9 + $0x8] sm:$0xff]
      %v1536 = vld [vmem:[%s9 + $0x10] sm:$0xff]
      %v1537 = vld [vmem:[%s9 + $0x18] sm:$0xff]
      %v1538 = vld [vmem:[%s9 + $0x20] sm:$0xff]
      %v1539 = vld [vmem:[%s9 + $0x28] sm:$0xff]
      %v1540 = vld [vmem:[%s9 + $0x30] sm:$0xff]
      %v1541 = vld [vmem:[%s9 + $0x38] sm:$0xff]
      %v1542 = vld [vmem:[%s9 + $0x40] sm:$0xff]
      %v1543 = vld [vmem:[%s9 + $0x48] sm:$0xff]
      %v1544 = vld [vmem:[%s9 + $0x50] sm:$0xff]
      %v1545 = vld [vmem:[%s9 + $0x58] sm:$0xff]
      %v1546 = vld [vmem:[%s9 + $0x60] sm:$0xff]
      %v1547 = vld [vmem:[%s9 + $0x68] sm:$0xff]
      %v1548 = vld [vmem:[%s9 + $0x70] sm:$0xff]
      %v1549 = vld [vmem:[%s9 + $0x78] sm:$0xff]
      %1550 = vmatprep.subr.mxu0 0.0
      %1551 = vmatpush1.msra.mxu0 %v1534
      %1552 = vmatprep.subr.mxu0 0.0
      %1553 = vmatpush1.msra.mxu0 %v1535
      %1554 = vmatprep.subr.mxu0 0.0
      %1555 = vmatpush1.msra.mxu0 %v1536
      %1556 = vmatprep.subr.mxu0 0.0
      %1557 = vmatpush1.msra.mxu0 %v1537
      %1558 = vmatprep.subr.mxu0 0.0
      %1559 = vmatpush1.msra.mxu0 %v1538
      %1560 = vmatprep.subr.mxu0 0.0
      %1561 = vmatpush1.msra.mxu0 %v1539
      %1562 = vmatprep.subr.mxu0 0.0
      %1563 = vmatpush1.msra.mxu0 %v1540
      %1564 = vmatprep.subr.mxu0 0.0
      %1565 = vmatpush1.msra.mxu0 %v1541
      %1566 = vmatprep.subr.mxu0 0.0
      %1567 = vmatpush1.msra.mxu0 %v1542
      %1568 = vmatprep.subr.mxu0 0.0
      %1569 = vmatpush1.msra.mxu0 %v1543
      %1570 = vmatprep.subr.mxu0 0.0
      %1571 = vmatpush1.msra.mxu0 %v1544
      %1572 = vmatprep.subr.mxu0 0.0
      %1573 = vmatpush1.msra.mxu0 %v1545
      %1574 = vmatprep.subr.mxu0 0.0
      %1575 = vmatpush1.msra.mxu0 %v1546
      %1576 = vmatprep.subr.mxu0 0.0
      %1577 = vmatpush1.msra.mxu0 %v1547
      %1578 = vmatprep.subr.mxu0 0.0
      %1579 = vmatpush1.msra.mxu0 %v1548
      %1580 = vmatprep.subr.mxu0 0.0
      %1581 = vmatpush1.msra.mxu0 %v1549
      %1582 = vmatprep.subr.mxu0 0.0
      %1583 = vmatpush1.msra.mxu0 0.0
      %1584 = vmatprep.subr.mxu0 0.0
      %1585 = vmatpush1.msra.mxu0 0.0
      %1586 = vmatprep.subr.mxu0 0.0
      %1587 = vmatpush1.msra.mxu0 0.0
      %1588 = vmatprep.subr.mxu0 0.0
      %1589 = vmatpush1.msra.mxu0 0.0
      %1590 = vmatprep.subr.mxu0 0.0
      %1591 = vmatpush1.msra.mxu0 0.0
      %1592 = vmatprep.subr.mxu0 0.0
      %1593 = vmatpush1.msra.mxu0 0.0
      %1594 = vmatprep.subr.mxu0 0.0
      %1595 = vmatpush1.msra.mxu0 0.0
      %1596 = vmatprep.subr.mxu0 0.0
      %1597 = vmatpush1.msra.mxu0 0.0
      %1598 = vmatprep.subr.mxu0 0.0
      %1599 = vmatpush1.msra.mxu0 0.0
      %1600 = vmatprep.subr.mxu0 0.0
      %1601 = vmatpush1.msra.mxu0 0.0
      %1602 = vmatprep.subr.mxu0 0.0
      %1603 = vmatpush1.msra.mxu0 0.0
      %1604 = vmatprep.subr.mxu0 0.0
      %1605 = vmatpush1.msra.mxu0 0.0
      %1606 = vmatprep.subr.mxu0 0.0
      %1607 = vmatpush1.msra.mxu0 0.0
      %1608 = vmatprep.subr.mxu0 0.0
      %1609 = vmatpush1.msra.mxu0 0.0
      %1610 = vmatprep.subr.mxu0 0.0
      %1611 = vmatpush1.msra.mxu0 0.0
      %1612 = vmatprep.subr.mxu0 0.0
      %1613 = vmatpush1.msra.mxu0 0.0
      %1614 = vmatprep.mubr.f32.mxu0 0.0
      %1615 = vmatmul.mubr.f32.gmra.mrb[0].mxu0 %v1518
      %v1616 = vpop.f32.mrb[0].mxu0
      %v1617 = vadd.f32 0.0, %v1616
      %v1618 = vpop.f32.mrb[0].mxu0
      %1619 = vmatprep.mubr.f32.mxu0 0.0
      %1620 = vmatmul.mubr.f32.gmra.mrb[0].mxu0 %v1519
      %v1621 = vpop.f32.mrb[0].mxu0
      %v1622 = vadd.f32 0.0, %v1621
      %v1623 = vpop.f32.mrb[0].mxu0
      %1624 = vmatprep.mubr.f32.mxu0 0.0
      %1625 = vmatmul.mubr.f32.gmra.mrb[0].mxu0 %v1520
      %v1626 = vpop.f32.mrb[0].mxu0
      %v1627 = vadd.f32 0.0, %v1626
      %v1628 = vpop.f32.mrb[0].mxu0
      %1629 = vmatprep.mubr.f32.mxu0 0.0
      %1630 = vmatmul.mubr.f32.gmra.mrb[0].mxu0 %v1521
      %v1631 = vpop.f32.mrb[0].mxu0
      %v1632 = vadd.f32 0.0, %v1631
      %v1633 = vpop.f32.mrb[0].mxu0
      %1634 = vmatprep.mubr.f32.mxu0 0.0
      %1635 = vmatmul.mubr.f32.gmra.mrb[0].mxu0 %v1522
      %v1636 = vpop.f32.mrb[0].mxu0
      %v1637 = vadd.f32 0.0, %v1636
      %v1638 = vpop.f32.mrb[0].mxu0
      %1639 = vmatprep.mubr.f32.mxu0 0.0
      %1640 = vmatmul.mubr.f32.gmra.mrb[0].mxu0 %v1523
      %v1641 = vpop.f32.mrb[0].mxu0
      %v1642 = vadd.f32 0.0, %v1641
      %v1643 = vpop.f32.mrb[0].mxu0
      %1644 = vmatprep.mubr.f32.mxu0 0.0
      %1645 = vmatmul.mubr.f32.gmra.mrb[0].mxu0 %v1524
      %v1646 = vpop.f32.mrb[0].mxu0
      %v1647 = vadd.f32 0.0, %v1646
      %v1648 = vpop.f32.mrb[0].mxu0
      %1649 = vmatprep.mubr.f32.mxu0 0.0
      %1650 = vmatmul.mubr.f32.gmra.mrb[0].mxu0 %v1525
      %v1651 = vpop.f32.mrb[0].mxu0
      %v1652 = vadd.f32 0.0, %v1651
      %v1653 = vpop.f32.mrb[0].mxu0
      %1654 = vmatprep.mubr.f32.mxu0 0.0
      %1655 = vmatmul.mubr.f32.gmra.mrb[0].mxu0 %v1526
      %v1656 = vpop.f32.mrb[0].mxu0
      %v1657 = vadd.f32 0.0, %v1656
      %v1658 = vpop.f32.mrb[0].mxu0
      %1659 = vmatprep.mubr.f32.mxu0 0.0
      %1660 = vmatmul.mubr.f32.gmra.mrb[0].mxu0 %v1527
      %v1661 = vpop.f32.mrb[0].mxu0
      %v1662 = vadd.f32 0.0, %v1661
      %v1663 = vpop.f32.mrb[0].mxu0
      %1664 = vmatprep.mubr.f32.mxu0 0.0
      %1665 = vmatmul.mubr.f32.gmra.mrb[0].mxu0 %v1528
      %v1666 = vpop.f32.mrb[0].mxu0
      %v1667 = vadd.f32 0.0, %v1666
      %v1668 = vpop.f32.mrb[0].mxu0
      %1669 = vmatprep.mubr.f32.mxu0 0.0
      %1670 = vmatmul.mubr.f32.gmra.mrb[0].mxu0 %v1529
      %v1671 = vpop.f32.mrb[0].mxu0
      %v1672 = vadd.f32 0.0, %v1671
      %v1673 = vpop.f32.mrb[0].mxu0
      %1674 = vmatprep.mubr.f32.mxu0 0.0
      %1675 = vmatmul.mubr.f32.gmra.mrb[0].mxu0 %v1530
      %v1676 = vpop.f32.mrb[0].mxu0
      %v1677 = vadd.f32 0.0, %v1676
      %v1678 = vpop.f32.mrb[0].mxu0
      %1679 = vmatprep.mubr.f32.mxu0 0.0
      %1680 = vmatmul.mubr.f32.gmra.mrb[0].mxu0 %v1531
      %v1681 = vpop.f32.mrb[0].mxu0
      %v1682 = vadd.f32 0.0, %v1681
      %v1683 = vpop.f32.mrb[0].mxu0
      %1684 = vmatprep.mubr.f32.mxu0 0.0
      %1685 = vmatmul.mubr.f32.gmra.mrb[0].mxu0 %v1532
      %v1686 = vpop.f32.mrb[0].mxu0
      %v1687 = vadd.f32 0.0, %v1686
      %v1688 = vpop.f32.mrb[0].mxu0
      %1689 = vmatprep.mubr.f32.mxu0 0.0
      %1690 = vmatmul.mubr.f32.gmra.mrb[0].mxu0 %v1533
      %v1691 = vpop.f32.mrb[0].mxu0
      %v1692 = vadd.f32 0.0, %v1691
      %v1693 = vpop.f32.mrb[0].mxu0
      %1694 = vdwg.mxu0
      %v1695 = vmul.f32 %v1518, %v1518
      %v1696 = vmul.f32 %v1519, %v1519
      %v1697 = vmul.f32 %v1520, %v1520
      %v1698 = vmul.f32 %v1521, %v1521
      %v1699 = vmul.f32 %v1522, %v1522
      %v1700 = vmul.f32 %v1523, %v1523
      %v1701 = vmul.f32 %v1524, %v1524
      %v1702 = vmul.f32 %v1525, %v1525
      %v1703 = vmul.f32 %v1526, %v1526
      %v1704 = vmul.f32 %v1527, %v1527
      %v1705 = vmul.f32 %v1528, %v1528
      %v1706 = vmul.f32 %v1529, %v1529
      %v1707 = vmul.f32 %v1530, %v1530
      %v1708 = vmul.f32 %v1531, %v1531
      %v1709 = vmul.f32 %v1532, %v1532
      %v1710 = vmul.f32 %v1533, %v1533
      %1711 = vmatprep.subr.mxu0 0.0
      %1712 = vmatpush1.msra.mxu0 %v1534
      %1713 = vmatprep.subr.mxu0 0.0
      %1714 = vmatpush1.msra.mxu0 %v1535
      %1715 = vmatprep.subr.mxu0 0.0
      %1716 = vmatpush1.msra.mxu0 %v1536
      %1717 = vmatprep.subr.mxu0 0.0
      %1718 = vmatpush1.msra.mxu0 %v1537
      %1719 = vmatprep.subr.mxu0 0.0
      %1720 = vmatpush1.msra.mxu0 %v1538
      %1721 = vmatprep.subr.mxu0 0.0
      %1722 = vmatpush1.msra.mxu0 %v1539
      %1723 = vmatprep.subr.mxu0 0.0
      %1724 = vmatpush1.msra.mxu0 %v1540
      %1725 = vmatprep.subr.mxu0 0.0
      %1726 = vmatpush1.msra.mxu0 %v1541
      %1727 = vmatprep.subr.mxu0 0.0
      %1728 = vmatpush1.msra.mxu0 %v1542
      %1729 = vmatprep.subr.mxu0 0.0
      %1730 = vmatpush1.msra.mxu0 %v1543
      %1731 = vmatprep.subr.mxu0 0.0
      %1732 = vmatpush1.msra.mxu0 %v1544
      %1733 = vmatprep.subr.mxu0 0.0
      %1734 = vmatpush1.msra.mxu0 %v1545
      %1735 = vmatprep.subr.mxu0 0.0
      %1736 = vmatpush1.msra.mxu0 %v1546
      %1737 = vmatprep.subr.mxu0 0.0
      %1738 = vmatpush1.msra.mxu0 %v1547
      %1739 = vmatprep.subr.mxu0 0.0
      %1740 = vmatpush1.msra.mxu0 %v1548
      %1741 = vmatprep.subr.mxu0 0.0
      %1742 = vmatpush1.msra.mxu0 %v1549
      %1743 = vmatprep.subr.mxu0 0.0
      %1744 = vmatpush1.msra.mxu0 0.0
      %1745 = vmatprep.subr.mxu0 0.0
      %1746 = vmatpush1.msra.mxu0 0.0
      %1747 = vmatprep.subr.mxu0 0.0
      %1748 = vmatpush1.msra.mxu0 0.0
      %1749 = vmatprep.subr.mxu0 0.0
      %1750 = vmatpush1.msra.mxu0 0.0
      %1751 = vmatprep.subr.mxu0 0.0
      %1752 = vmatpush1.msra.mxu0 0.0
      %1753 = vmatprep.subr.mxu0 0.0
      %1754 = vmatpush1.msra.mxu0 0.0
      %1755 = vmatprep.subr.mxu0 0.0
      %1756 = vmatpush1.msra.mxu0 0.0
      %1757 = vmatprep.subr.mxu0 0.0
      %1758 = vmatpush1.msra.mxu0 0.0
      %1759 = vmatprep.subr.mxu0 0.0
      %1760 = vmatpush1.msra.mxu0 0.0
      %1761 = vmatprep.subr.mxu0 0.0
      %1762 = vmatpush1.msra.mxu0 0.0
      %1763 = vmatprep.subr.mxu0 0.0
      %1764 = vmatpush1.msra.mxu0 0.0
      %1765 = vmatprep.subr.mxu0 0.0
      %1766 = vmatpush1.msra.mxu0 0.0
      %1767 = vmatprep.subr.mxu0 0.0
      %1768 = vmatpush1.msra.mxu0 0.0
      %1769 = vmatprep.subr.mxu0 0.0
      %1770 = vmatpush1.msra.mxu0 0.0
      %1771 = vmatprep.subr.mxu0 0.0
      %1772 = vmatpush1.msra.mxu0 0.0
      %1773 = vmatprep.subr.mxu0 0.0
      %1774 = vmatpush1.msra.mxu0 0.0
      %1775 = vmatprep.mubr.f32.mxu0 0.0
      %1776 = vmatmul.mubr.f32.gmra.mrb[0].mxu0 %v1695
      %v1777 = vpop.f32.mrb[0].mxu0
      %v1778 = vadd.f32 0.0, %v1777
      %v1779 = vpop.f32.mrb[0].mxu0
      %1780 = vmatprep.mubr.f32.mxu0 0.0
      %1781 = vmatmul.mubr.f32.gmra.mrb[0].mxu0 %v1696
      %v1782 = vpop.f32.mrb[0].mxu0
      %v1783 = vadd.f32 0.0, %v1782
      %v1784 = vpop.f32.mrb[0].mxu0
      %1785 = vmatprep.mubr.f32.mxu0 0.0
      %1786 = vmatmul.mubr.f32.gmra.mrb[0].mxu0 %v1697
      %v1787 = vpop.f32.mrb[0].mxu0
      %v1788 = vadd.f32 0.0, %v1787
      %v1789 = vpop.f32.mrb[0].mxu0
      %1790 = vmatprep.mubr.f32.mxu0 0.0
      %1791 = vmatmul.mubr.f32.gmra.mrb[0].mxu0 %v1698
      %v1792 = vpop.f32.mrb[0].mxu0
      %v1793 = vadd.f32 0.0, %v1792
      %v1794 = vpop.f32.mrb[0].mxu0
      %1795 = vmatprep.mubr.f32.mxu0 0.0
      %1796 = vmatmul.mubr.f32.gmra.mrb[0].mxu0 %v1699
      %v1797 = vpop.f32.mrb[0].mxu0
      %v1798 = vadd.f32 0.0, %v1797
      %v1799 = vpop.f32.mrb[0].mxu0
      %1800 = vmatprep.mubr.f32.mxu0 0.0
      %1801 = vmatmul.mubr.f32.gmra.mrb[0].mxu0 %v1700
      %v1802 = vpop.f32.mrb[0].mxu0
      %v1803 = vadd.f32 0.0, %v1802
      %v1804 = vpop.f32.mrb[0].mxu0
      %1805 = vmatprep.mubr.f32.mxu0 0.0
      %1806 = vmatmul.mubr.f32.gmra.mrb[0].mxu0 %v1701
      %v1807 = vpop.f32.mrb[0].mxu0
      %v1808 = vadd.f32 0.0, %v1807
      %v1809 = vpop.f32.mrb[0].mxu0
      %1810 = vmatprep.mubr.f32.mxu0 0.0
      %1811 = vmatmul.mubr.f32.gmra.mrb[0].mxu0 %v1702
      %v1812 = vpop.f32.mrb[0].mxu0
      %v1813 = vadd.f32 0.0, %v1812
      %v1814 = vpop.f32.mrb[0].mxu0
      %1815 = vmatprep.mubr.f32.mxu0 0.0
      %1816 = vmatmul.mubr.f32.gmra.mrb[0].mxu0 %v1703
      %v1817 = vpop.f32.mrb[0].mxu0
      %v1818 = vadd.f32 0.0, %v1817
      %v1819 = vpop.f32.mrb[0].mxu0
      %1820 = vmatprep.mubr.f32.mxu0 0.0
      %1821 = vmatmul.mubr.f32.gmra.mrb[0].mxu0 %v1704
      %v1822 = vpop.f32.mrb[0].mxu0
      %v1823 = vadd.f32 0.0, %v1822
      %v1824 = vpop.f32.mrb[0].mxu0
      %1825 = vmatprep.mubr.f32.mxu0 0.0
      %1826 = vmatmul.mubr.f32.gmra.mrb[0].mxu0 %v1705
      %v1827 = vpop.f32.mrb[0].mxu0
      %v1828 = vadd.f32 0.0, %v1827
      %v1829 = vpop.f32.mrb[0].mxu0
      %1830 = vmatprep.mubr.f32.mxu0 0.0
      %1831 = vmatmul.mubr.f32.gmra.mrb[0].mxu0 %v1706
      %v1832 = vpop.f32.mrb[0].mxu0
      %v1833 = vadd.f32 0.0, %v1832
      %v1834 = vpop.f32.mrb[0].mxu0
      %1835 = vmatprep.mubr.f32.mxu0 0.0
      %1836 = vmatmul.mubr.f32.gmra.mrb[0].mxu0 %v1707
      %v1837 = vpop.f32.mrb[0].mxu0
      %v1838 = vadd.f32 0.0, %v1837
      %v1839 = vpop.f32.mrb[0].mxu0
      %1840 = vmatprep.mubr.f32.mxu0 0.0
      %1841 = vmatmul.mubr.f32.gmra.mrb[0].mxu0 %v1708
      %v1842 = vpop.f32.mrb[0].mxu0
      %v1843 = vadd.f32 0.0, %v1842
      %v1844 = vpop.f32.mrb[0].mxu0
      %1845 = vmatprep.mubr.f32.mxu0 0.0
      %1846 = vmatmul.mubr.f32.gmra.mrb[0].mxu0 %v1709
      %v1847 = vpop.f32.mrb[0].mxu0
      %v1848 = vadd.f32 0.0, %v1847
      %v1849 = vpop.f32.mrb[0].mxu0
      %1850 = vmatprep.mubr.f32.mxu0 0.0
      %1851 = vmatmul.mubr.f32.gmra.mrb[0].mxu0 %v1710
      %v1852 = vpop.f32.mrb[0].mxu0
      %v1853 = vadd.f32 0.0, %v1852
      %v1854 = vpop.f32.mrb[0].mxu0
      %1855 = vdwg.mxu0
      %v1856 = vsub.f32 %v1518, %v1617
      %v1857 = vsub.f32 %v1519, %v1622
      %v1858 = vsub.f32 %v1520, %v1627
      %v1859 = vsub.f32 %v1521, %v1632
      %v1860 = vsub.f32 %v1522, %v1637
      %v1861 = vsub.f32 %v1523, %v1642
      %v1862 = vsub.f32 %v1524, %v1647
      %v1863 = vsub.f32 %v1525, %v1652
      %v1864 = vsub.f32 %v1526, %v1657
      %v1865 = vsub.f32 %v1527, %v1662
      %v1866 = vsub.f32 %v1528, %v1667
      %v1867 = vsub.f32 %v1529, %v1672
      %v1868 = vsub.f32 %v1530, %v1677
      %v1869 = vsub.f32 %v1531, %v1682
      %v1870 = vsub.f32 %v1532, %v1687
      %v1871 = vsub.f32 %v1533, %v1692
      %v1872 = vmul.f32 %v1617, %v1617
      %v1873 = vmul.f32 %v1622, %v1622
      %v1874 = vmul.f32 %v1627, %v1627
      %v1875 = vmul.f32 %v1632, %v1632
      %v1876 = vmul.f32 %v1637, %v1637
      %v1877 = vmul.f32 %v1642, %v1642
      %v1878 = vmul.f32 %v1647, %v1647
      %v1879 = vmul.f32 %v1652, %v1652
      %v1880 = vmul.f32 %v1657, %v1657
      %v1881 = vmul.f32 %v1662, %v1662
      %v1882 = vmul.f32 %v1667, %v1667
      %v1883 = vmul.f32 %v1672, %v1672
      %v1884 = vmul.f32 %v1677, %v1677
      %v1885 = vmul.f32 %v1682, %v1682
      %v1886 = vmul.f32 %v1687, %v1687
      %v1887 = vmul.f32 %v1692, %v1692
      %v1888 = vsub.f32 %v1778, %v1872
      %v1889 = vsub.f32 %v1783, %v1873
      %v1890 = vsub.f32 %v1788, %v1874
      %v1891 = vsub.f32 %v1793, %v1875
      %v1892 = vsub.f32 %v1798, %v1876
      %v1893 = vsub.f32 %v1803, %v1877
      %v1894 = vsub.f32 %v1808, %v1878
      %v1895 = vsub.f32 %v1813, %v1879
      %v1896 = vsub.f32 %v1818, %v1880
      %v1897 = vsub.f32 %v1823, %v1881
      %v1898 = vsub.f32 %v1828, %v1882
      %v1899 = vsub.f32 %v1833, %v1883
      %v1900 = vsub.f32 %v1838, %v1884
      %v1901 = vsub.f32 %v1843, %v1885
      %v1902 = vsub.f32 %v1848, %v1886
      %v1903 = vsub.f32 %v1853, %v1887
      %v1904 = vadd.f32 %v1888, 1e-05
      %v1905 = vadd.f32 %v1889, 1e-05
      %v1906 = vadd.f32 %v1890, 1e-05
      %v1907 = vadd.f32 %v1891, 1e-05
      %v1908 = vadd.f32 %v1892, 1e-05
      %v1909 = vadd.f32 %v1893, 1e-05
      %v1910 = vadd.f32 %v1894, 1e-05
      %v1911 = vadd.f32 %v1895, 1e-05
      %v1912 = vadd.f32 %v1896, 1e-05
      %v1913 = vadd.f32 %v1897, 1e-05
      %v1914 = vadd.f32 %v1898, 1e-05
      %v1915 = vadd.f32 %v1899, 1e-05
      %v1916 = vadd.f32 %v1900, 1e-05
      %v1917 = vadd.f32 %v1901, 1e-05
      %v1918 = vadd.f32 %v1902, 1e-05
      %v1919 = vadd.f32 %v1903, 1e-05
      %v1920 = vrsqrt.pop %v1904
      %v1921 = vrsqrt.pop %v1905
      %v1922 = vrsqrt.pop %v1906
      %v1923 = vrsqrt.pop %v1907
      %v1924 = vrsqrt.pop %v1908
      %v1925 = vrsqrt.pop %v1909
      %v1926 = vrsqrt.pop %v1910
      %v1927 = vrsqrt.pop %v1911
      %v1928 = vrsqrt.pop %v1912
      %v1929 = vrsqrt.pop %v1913
      %v1930 = vrsqrt.pop %v1914
      %v1931 = vrsqrt.pop %v1915
      %v1932 = vrsqrt.pop %v1916
      %v1933 = vrsqrt.pop %v1917
      %v1934 = vrsqrt.pop %v1918
      %v1935 = vrsqrt.pop %v1919
      %v1936 = vmul.f32 %v1856, %v1920
      %v1937 = vmul.f32 %v1857, %v1921
      %v1938 = vmul.f32 %v1858, %v1922
      %v1939 = vmul.f32 %v1859, %v1923
      %v1940 = vmul.f32 %v1860, %v1924
      %v1941 = vmul.f32 %v1861, %v1925
      %v1942 = vmul.f32 %v1862, %v1926
      %v1943 = vmul.f32 %v1863, %v1927
      %v1944 = vmul.f32 %v1864, %v1928
      %v1945 = vmul.f32 %v1865, %v1929
      %v1946 = vmul.f32 %v1866, %v1930
      %v1947 = vmul.f32 %v1867, %v1931
      %v1948 = vmul.f32 %v1868, %v1932
      %v1949 = vmul.f32 %v1869, %v1933
      %v1950 = vmul.f32 %v1870, %v1934
      %v1951 = vmul.f32 %v1871, %v1935
      %v1952 = vld [vmem:[%s7] sm:$0x1]
      %v1954 = vlaneseq
      %v1955 = vshrl.u32 %v1954, 7
      %v1956 = vsub.s32 0, %v1955
      %v1957 = vrot.slane %v1952, %v1956
      %v1959 = vmul.f32 %v1936, %v1957
      %v1960 = vmul.f32 %v1937, %v1957
      %v1961 = vmul.f32 %v1938, %v1957
      %v1962 = vmul.f32 %v1939, %v1957
      %v1963 = vmul.f32 %v1940, %v1957
      %v1964 = vmul.f32 %v1941, %v1957
      %v1965 = vmul.f32 %v1942, %v1957
      %v1966 = vmul.f32 %v1943, %v1957
      %v1967 = vmul.f32 %v1944, %v1957
      %v1968 = vmul.f32 %v1945, %v1957
      %v1969 = vmul.f32 %v1946, %v1957
      %v1970 = vmul.f32 %v1947, %v1957
      %v1971 = vmul.f32 %v1948, %v1957
      %v1972 = vmul.f32 %v1949, %v1957
      %v1973 = vmul.f32 %v1950, %v1957
      %v1974 = vmul.f32 %v1951, %v1957
      %v1975 = vld [vmem:[%s8] sm:$0x1]
      %v1977 = vlaneseq
      %v1978 = vshrl.u32 %v1977, 7
      %v1979 = vsub.s32 0, %v1978
      %v1980 = vrot.slane %v1975, %v1979
      %v1982 = vadd.f32 %v1959, %v1980
      %v1983 = vadd.f32 %v1960, %v1980
      %v1984 = vadd.f32 %v1961, %v1980
      %v1985 = vadd.f32 %v1962, %v1980
      %v1986 = vadd.f32 %v1963, %v1980
      %v1987 = vadd.f32 %v1964, %v1980
      %v1988 = vadd.f32 %v1965, %v1980
      %v1989 = vadd.f32 %v1966, %v1980
      %v1990 = vadd.f32 %v1967, %v1980
      %v1991 = vadd.f32 %v1968, %v1980
      %v1992 = vadd.f32 %v1969, %v1980
      %v1993 = vadd.f32 %v1970, %v1980
      %v1994 = vadd.f32 %v1971, %v1980
      %v1995 = vadd.f32 %v1972, %v1980
      %v1996 = vadd.f32 %v1973, %v1980
      %v1997 = vadd.f32 %v1974, %v1980
      %v1998 = vpack.c.bf16 %v1983, %v1982
      %v1999 = vpack.c.bf16 %v1985, %v1984
      %v2000 = vpack.c.bf16 %v1987, %v1986
      %v2001 = vpack.c.bf16 %v1989, %v1988
      %v2002 = vpack.c.bf16 %v1991, %v1990
      %v2003 = vpack.c.bf16 %v1993, %v1992
      %v2004 = vpack.c.bf16 %v1995, %v1994
      %v2005 = vpack.c.bf16 %v1997, %v1996
      %s2006 = scalar_lea.vmem %s4, 128
      %v2007 = vld [vmem:[%s2006] sm:$0xf]
      %v2008 = vld [vmem:[%s2006 + $0x4] sm:$0xf]
      %v2009 = vld [vmem:[%s2006 + $0x8] sm:$0xf]
      %v2010 = vld [vmem:[%s2006 + $0xc] sm:$0xf]
      %v2011 = vld [vmem:[%s2006 + $0x10] sm:$0xf]
      %v2012 = vld [vmem:[%s2006 + $0x14] sm:$0xf]
      %v2013 = vld [vmem:[%s2006 + $0x18] sm:$0xf]
      %v2014 = vld [vmem:[%s2006 + $0x1c] sm:$0xf]
      %v2015 = vld [vmem:[%s2006 + $0x20] sm:$0xf]
      %v2016 = vld [vmem:[%s2006 + $0x24] sm:$0xf]
      %v2017 = vld [vmem:[%s2006 + $0x28] sm:$0xf]
      %v2018 = vld [vmem:[%s2006 + $0x2c] sm:$0xf]
      %v2019 = vld [vmem:[%s2006 + $0x30] sm:$0xf]
      %v2020 = vld [vmem:[%s2006 + $0x34] sm:$0xf]
      %v2021 = vld [vmem:[%s2006 + $0x38] sm:$0xf]
      %v2022 = vld [vmem:[%s2006 + $0x3c] sm:$0xf]
      %v2023 = vld [vmem:[%s6 + $0x3] sm:$0x1]
      %v2024 = vlaneseq
      %v2025 = vshrl.u32 %v2024, 7
      %v2026 = vsub.s32 0, %v2025
      %v2027 = vrot.slane %v2023, %v2026
      %v2044 = vunpack.c.l.b16 %v2007
      %v2045 = vunpack.c.l.b16 %v2008
      %v2046 = vunpack.c.l.b16 %v2009
      %v2047 = vunpack.c.l.b16 %v2010
      %v2048 = vunpack.c.l.b16 %v2011
      %v2049 = vunpack.c.l.b16 %v2012
      %v2050 = vunpack.c.l.b16 %v2013
      %v2051 = vunpack.c.l.b16 %v2014
      %v2052 = vunpack.c.l.b16 %v2015
      %v2053 = vunpack.c.l.b16 %v2016
      %v2054 = vunpack.c.l.b16 %v2017
      %v2055 = vunpack.c.l.b16 %v2018
      %v2056 = vunpack.c.l.b16 %v2019
      %v2057 = vunpack.c.l.b16 %v2020
      %v2058 = vunpack.c.l.b16 %v2021
      %v2059 = vunpack.c.l.b16 %v2022
      %v2060 = vpack.c.b16 %v2045, %v2044
      %v2061 = vpack.c.b16 %v2047, %v2046
      %v2062 = vpack.c.b16 %v2049, %v2048
      %v2063 = vpack.c.b16 %v2051, %v2050
      %v2064 = vpack.c.b16 %v2053, %v2052
      %v2065 = vpack.c.b16 %v2055, %v2054
      %v2066 = vpack.c.b16 %v2057, %v2056
      %v2067 = vpack.c.b16 %v2059, %v2058
      %2076 = vmatprep.subr.bf16.mxu0 0
      %2077 = vmatpush1.bf16.msra.mxu0 %v2060
      %2078 = vmatprep.subr.bf16.mxu0 0
      %2079 = vmatpush1.bf16.msra.mxu0 %v2061
      %2080 = vmatprep.subr.bf16.mxu0 0
      %2081 = vmatpush1.bf16.msra.mxu0 %v2062
      %2082 = vmatprep.subr.bf16.mxu0 0
      %2083 = vmatpush1.bf16.msra.mxu0 %v2063
      %2084 = vmatprep.subr.bf16.mxu0 0
      %2085 = vmatpush1.bf16.msra.mxu0 %v2064
      %2086 = vmatprep.subr.bf16.mxu0 0
      %2087 = vmatpush1.bf16.msra.mxu0 %v2065
      %2088 = vmatprep.subr.bf16.mxu0 0
      %2089 = vmatpush1.bf16.msra.mxu0 %v2066
      %2090 = vmatprep.subr.bf16.mxu0 0
      %2091 = vmatpush1.bf16.msra.mxu0 %v2067
      %2092 = vmatprep.subr.bf16.mxu0 0
      %2093 = vmatpush1.bf16.msra.mxu0 0
      %2094 = vmatprep.subr.bf16.mxu0 0
      %2095 = vmatpush1.bf16.msra.mxu0 0
      %2096 = vmatprep.subr.bf16.mxu0 0
      %2097 = vmatpush1.bf16.msra.mxu0 0
      %2098 = vmatprep.subr.bf16.mxu0 0
      %2099 = vmatpush1.bf16.msra.mxu0 0
      %2100 = vmatprep.subr.bf16.mxu0 0
      %2101 = vmatpush1.bf16.msra.mxu0 0
      %2102 = vmatprep.subr.bf16.mxu0 0
      %2103 = vmatpush1.bf16.msra.mxu0 0
      %2104 = vmatprep.subr.bf16.mxu0 0
      %2105 = vmatpush1.bf16.msra.mxu0 0
      %2106 = vmatprep.subr.bf16.mxu0 0
      %2107 = vmatpush1.bf16.msra.mxu0 0
      %2108 = vmatprep.mubr.bf16.mxu0 0
      %2109 = vmatmul.mubr.bf16.gmra.mrb[0].mxu0 %v1998
      %v2110 = vpop.f32.mrb[0].mxu0
      %v2111 = vadd.f32 %v2027, %v2110
      %v2112 = vpop.f32.mrb[0].mxu0
      %v2113 = vpop.f32.mrb[0].mxu0
      %v2114 = vadd.f32 %v2027, %v2113
      %v2115 = vpop.f32.mrb[0].mxu0
      %2116 = vmatprep.mubr.bf16.mxu0 0
      %2117 = vmatmul.mubr.bf16.gmra.mrb[0].mxu0 %v1999
      %v2118 = vpop.f32.mrb[0].mxu0
      %v2119 = vadd.f32 %v2027, %v2118
      %v2120 = vpop.f32.mrb[0].mxu0
      %v2121 = vpop.f32.mrb[0].mxu0
      %v2122 = vadd.f32 %v2027, %v2121
      %v2123 = vpop.f32.mrb[0].mxu0
      %2124 = vmatprep.mubr.bf16.mxu0 0
      %2125 = vmatmul.mubr.bf16.gmra.mrb[0].mxu0 %v2000
      %v2126 = vpop.f32.mrb[0].mxu0
      %v2127 = vadd.f32 %v2027, %v2126
      %v2128 = vpop.f32.mrb[0].mxu0
      %v2129 = vpop.f32.mrb[0].mxu0
      %v2130 = vadd.f32 %v2027, %v2129
      %v2131 = vpop.f32.mrb[0].mxu0
      %2132 = vmatprep.mubr.bf16.mxu0 0
      %2133 = vmatmul.mubr.bf16.gmra.mrb[0].mxu0 %v2001
      %v2134 = vpop.f32.mrb[0].mxu0
      %v2135 = vadd.f32 %v2027, %v2134
      %v2136 = vpop.f32.mrb[0].mxu0
      %v2137 = vpop.f32.mrb[0].mxu0
      %v2138 = vadd.f32 %v2027, %v2137
      %v2139 = vpop.f32.mrb[0].mxu0
      %2140 = vmatprep.mubr.bf16.mxu0 0
      %2141 = vmatmul.mubr.bf16.gmra.mrb[0].mxu0 %v2002
      %v2142 = vpop.f32.mrb[0].mxu0
      %v2143 = vadd.f32 %v2027, %v2142
      %v2144 = vpop.f32.mrb[0].mxu0
      %v2145 = vpop.f32.mrb[0].mxu0
      %v2146 = vadd.f32 %v2027, %v2145
      %v2147 = vpop.f32.mrb[0].mxu0
      %2148 = vmatprep.mubr.bf16.mxu0 0
      %2149 = vmatmul.mubr.bf16.gmra.mrb[0].mxu0 %v2003
      %v2150 = vpop.f32.mrb[0].mxu0
      %v2151 = vadd.f32 %v2027, %v2150
      %v2152 = vpop.f32.mrb[0].mxu0
      %v2153 = vpop.f32.mrb[0].mxu0
      %v2154 = vadd.f32 %v2027, %v2153
      %v2155 = vpop.f32.mrb[0].mxu0
      %2156 = vmatprep.mubr.bf16.mxu0 0
      %2157 = vmatmul.mubr.bf16.gmra.mrb[0].mxu0 %v2004
      %v2158 = vpop.f32.mrb[0].mxu0
      %v2159 = vadd.f32 %v2027, %v2158
      %v2160 = vpop.f32.mrb[0].mxu0
      %v2161 = vpop.f32.mrb[0].mxu0
      %v2162 = vadd.f32 %v2027, %v2161
      %v2163 = vpop.f32.mrb[0].mxu0
      %2164 = vmatprep.mubr.bf16.mxu0 0
      %2165 = vmatmul.mubr.bf16.gmra.mrb[0].mxu0 %v2005
      %v2166 = vpop.f32.mrb[0].mxu0
      %v2167 = vadd.f32 %v2027, %v2166
      %v2168 = vpop.f32.mrb[0].mxu0
      %v2169 = vpop.f32.mrb[0].mxu0
      %v2170 = vadd.f32 %v2027, %v2169
      %v2171 = vpop.f32.mrb[0].mxu0
      %2172 = vdwg.mxu0
      %v2173 = vpack.c.bf16 %v2114, %v2111
      %v2174 = vpack.c.bf16 %v2122, %v2119
      %v2175 = vpack.c.bf16 %v2130, %v2127
      %v2176 = vpack.c.bf16 %v2138, %v2135
      %v2177 = vpack.c.bf16 %v2146, %v2143
      %v2178 = vpack.c.bf16 %v2154, %v2151
      %v2179 = vpack.c.bf16 %v2162, %v2159
      %v2180 = vpack.c.bf16 %v2170, %v2167
      %v2189 = vunpack.c.l.b16 %v2173
      %v2190 = vunpack.c.h.b16 %v2173
      %v2191 = vunpack.c.l.b16 %v2174
      %v2192 = vunpack.c.h.b16 %v2174
      %v2193 = vunpack.c.l.b16 %v2175
      %v2194 = vunpack.c.h.b16 %v2175
      %v2195 = vunpack.c.l.b16 %v2176
      %v2196 = vunpack.c.h.b16 %v2176
      %v2197 = vunpack.c.l.b16 %v2177
      %v2198 = vunpack.c.h.b16 %v2177
      %v2199 = vunpack.c.l.b16 %v2178
      %v2200 = vunpack.c.h.b16 %v2178
      %v2201 = vunpack.c.l.b16 %v2179
      %v2202 = vunpack.c.h.b16 %v2179
      %v2203 = vunpack.c.l.b16 %v2180
      %v2204 = vunpack.c.h.b16 %v2180
      %v2205 = vpack.c.b16 %v2189, %v2189
      %v2206 = vpack.c.b16 %v2190, %v2190
      %v2207 = vpack.c.b16 %v2191, %v2191
      %v2208 = vpack.c.b16 %v2192, %v2192
      %v2209 = vpack.c.b16 %v2193, %v2193
      %v2210 = vpack.c.b16 %v2194, %v2194
      %v2211 = vpack.c.b16 %v2195, %v2195
      %v2212 = vpack.c.b16 %v2196, %v2196
      %v2213 = vpack.c.b16 %v2197, %v2197
      %v2214 = vpack.c.b16 %v2198, %v2198
      %v2215 = vpack.c.b16 %v2199, %v2199
      %v2216 = vpack.c.b16 %v2200, %v2200
      %v2217 = vpack.c.b16 %v2201, %v2201
      %v2218 = vpack.c.b16 %v2202, %v2202
      %v2219 = vpack.c.b16 %v2203, %v2203
      %v2220 = vpack.c.b16 %v2204, %v2204
      %2237 = vst [vmem:[%s364] sm:$0xf] %v2205
      %2238 = vst [vmem:[%s364 + $0x4] sm:$0xf] %v2206
      %2239 = vst [vmem:[%s364 + $0x8] sm:$0xf] %v2207
      %2240 = vst [vmem:[%s364 + $0xc] sm:$0xf] %v2208
      %2241 = vst [vmem:[%s364 + $0x10] sm:$0xf] %v2209
      %2242 = vst [vmem:[%s364 + $0x14] sm:$0xf] %v2210
      %2243 = vst [vmem:[%s364 + $0x18] sm:$0xf] %v2211
      %2244 = vst [vmem:[%s364 + $0x1c] sm:$0xf] %v2212
      %2245 = vst [vmem:[%s364 + $0x20] sm:$0xf] %v2213
      %2246 = vst [vmem:[%s364 + $0x24] sm:$0xf] %v2214
      %2247 = vst [vmem:[%s364 + $0x28] sm:$0xf] %v2215
      %2248 = vst [vmem:[%s364 + $0x2c] sm:$0xf] %v2216
      %2249 = vst [vmem:[%s364 + $0x30] sm:$0xf] %v2217
      %2250 = vst [vmem:[%s364 + $0x34] sm:$0xf] %v2218
      %2251 = vst [vmem:[%s364 + $0x38] sm:$0xf] %v2219
      %2252 = vst [vmem:[%s364 + $0x3c] sm:$0xf] %v2220
      %s2253 = smul.u32 16, %s21
      %p2254 = scmp.lt.s32.totalorder %s2253, 31
      %s2255 = scalar_select %p2254, %s2253, 31
      %s2256 = smul.addr %s2255, 4
      %s2257 = scalar_lea.vmem %s10, %s2256
      // Predicated region
      $region61: #{_lambda_.1} parent=59 // pred_check
        %p2258 = pneg %p254
      $region62: #{_lambda_.1} parent=59 // pred_check_branch
        %2260 = sbr.rel (%p2258) target = $region64
      $region63: #{_lambda_.1} parent=59 // pred_region
        %s2261 = smul.u32 16, %s21
      $region64: #{_lambda_.1} parent=59 // pred_fallthru
        _
    $region60: #{_lambda_.1} parent=5 // pred_fallthru
      _
    %p2262 = scmp.le.s32.totalorder 2, %s16
    // Predicated region
    $region65: #{_lambda_.1} parent=5 // pred_check
      %p2263 = pneg %p2262
    $region66: #{_lambda_.1} parent=5 // pred_check_branch
      %2265 = sbr.rel (%p2263) target = $region68
    $region67: #{_lambda_.1} parent=5 // pred_region
      %s2266 = ssub.s32 %s16, 2
      // Predicated region
      $region69: #{_lambda_.1} parent=67 // pred_check
        %p2267 = pneg %p260
      $region70: #{_lambda_.1} parent=67 // pred_check_branch
        %2269 = sbr.rel (%p2267) target = $region72
      $region71: #{_lambda_.1} parent=67 // pred_region
        %s2270 = smul.u32 16, %s22
        %p2271 = scmp.lt.s32.totalorder %s2270, 31
        %s2272 = scalar_select %p2271, %s2270, 31
        %s2273 = smul.addr %s2272, 4
        %s2274 = scalar_lea.vmem %s10, %s2273
      $region72: #{_lambda_.1} parent=67 // pred_fallthru
        _
    $region68: #{_lambda_.1} parent=5 // pred_fallthru
      _
  $region6: #{_lambda_.1} parent=0 // loop_footer
    %s20 = sadd.s32 1, %s16
  $region7: #{_lambda_.1} parent=0 // loop_footer_branch
    %15 = sbr.rel target = $region3
  $region8: #{_lambda_.1} parent=0 // loop_exit
    _

</llo_original>
